<compile_context>
chip_gen: v6e
topology: v6e:2x2x1
jax: 0.10.0
libtpu: 0.0.40
codegen_flags: <defaults>
</compile_context>

<pallas_src>
import functools

import jax
import jax.numpy as jnp
from jax.experimental import pallas as pl
from jax.experimental.pallas import tpu as pltpu


def _layer_norm(z, gamma, beta):
    # Keep elementwise math in f32 (v5e has no bf16 VPU/EUP path).
    mu = jnp.mean(z, axis=-1, keepdims=True)
    var = jnp.mean((z - mu) ** 2, axis=-1, keepdims=True)
    return (z - mu) * jax.lax.rsqrt(var + 1e-5) * gamma + beta


# ---------------------------------------------------------------------------
# Pallas kernel: one full transformer encoder block for ONE batch element
#   Y = LayerNorm(X + MultiHeadAttention(X, X, X, valid_len))
#   Z = LayerNorm(Y + FFN(Y))
# Grid = (batch,) marked "parallel".  valid_lens is scalar-prefetched to SMEM.
# ---------------------------------------------------------------------------
def encoder_block_kernel(
    valid_lens_ref,                 # SMEM (B,) int32   (scalar prefetch)
    x_ref,                          # (1, S, H) f32
    wqkv_ref, bqkv_ref,             # (H, 3H) bf16, (1, 3H) f32  fused q/k/v proj
    wo_ref, bo_ref,                 # (H, H)  bf16, (1, H)  f32  output proj
    g1_ref, be1_ref,                # layernorm 1     (1, H) f32
    w1_ref, b1_ref,                 # FFN dense 1     (H, F) bf16, (1, F) f32
    w2_ref, b2_ref,                 # FFN dense 2     (F, H) bf16, (1, H) f32
    g2_ref, be2_ref,                # layernorm 2     (1, H) f32
    out_ref,                        # (1, S, H)
    *, num_heads):
    b = pl.program_id(0)
    x = x_ref[0]                                      # (S, H) f32
    S, H = x.shape
    hd = H // num_heads
    scale = 1.0 / jnp.sqrt(jnp.float32(hd))

    # --- additive attention-mask bias, computed ONCE (d2l masked_softmax) ---
    vl = valid_lens_ref[b]
    col = jax.lax.broadcasted_iota(jnp.int32, (1, S), 1)            # key positions
    mask_bias = jnp.where(col < vl, 0.0, -1e6).astype(jnp.float32)  # (1, S)

    # --- fused Q/K/V projection: one full-width (S,H)@(H,3H) matmul ---------
    x_bf = x.astype(jnp.bfloat16)
    qkv = jnp.dot(x_bf, wqkv_ref[...], preferred_element_type=jnp.float32)
    qkv = qkv + bqkv_ref[...]                                       # (S, 3H) f32
    q = qkv[:, :H]
    k = qkv[:, H:2 * H]
    v = qkv[:, 2 * H:]

    # --- per-head scores / softmax via batched einsum -----------------------
    def to_heads(t):                                  # (S, H) -> (nh, S, hd)
        return jnp.transpose(
            t.reshape(S, num_heads, hd), (1, 0, 2)).astype(jnp.bfloat16)

    qh, kh, vh = to_heads(q), to_heads(k), to_heads(v)
    # TODO(synk): for realistic S (>=512) tile over the key dimension with a
    # flash-style online softmax instead of materializing (nh, S, S) scores.
    s = jnp.einsum('hqd,hkd->hqk', qh, kh,
                   preferred_element_type=jnp.float32) * scale      # (nh, S, S)
    s = s + mask_bias[None, :, :]
    s = s - jnp.max(s, axis=-1, keepdims=True)
    e = jnp.exp(s)
    a = e * pl.reciprocal(jnp.sum(e, axis=-1, keepdims=True), approx=True)

    ctx = jnp.einsum('hqk,hkd->hqd', a.astype(jnp.bfloat16), vh,
                     preferred_element_type=jnp.float32)            # (nh, S, hd)
    ctx = jnp.transpose(ctx, (1, 0, 2)).reshape(S, H)               # concat heads

    # --- output projection: single full-width matmul ------------------------
    attn = jnp.dot(ctx.astype(jnp.bfloat16), wo_ref[...],
                   preferred_element_type=jnp.float32) + bo_ref[...]

    # AddNorm 1   (dropout is identity at inference)
    y = _layer_norm(x + attn, g1_ref[...], be1_ref[...])

    # Position-wise FFN: dense -> relu -> dense
    hmid = jnp.maximum(
        jnp.dot(y.astype(jnp.bfloat16), w1_ref[...],
                preferred_element_type=jnp.float32) + b1_ref[...], 0.0)
    ffn = jnp.dot(hmid.astype(jnp.bfloat16), w2_ref[...],
                  preferred_element_type=jnp.float32) + b2_ref[...]

    # AddNorm 2
    z = _layer_norm(y + ffn, g2_ref[...], be2_ref[...])
    out_ref[0] = z.astype(out_ref.dtype)


# ---------------------------------------------------------------------------
# Wrapper: pallas_call for one encoder block
# ---------------------------------------------------------------------------
def encoder_block(X, valid_lens, layer, num_heads):
    B, S, H = X.shape

    ordered = [
        layer["wqkv"], layer["bqkv"], layer["wo"], layer["bo"],
        layer["g1"], layer["be1"],
        layer["w1"], layer["b1"], layer["w2"], layer["b2"],
        layer["g2"], layer["be2"],
    ]

    def full_spec(arr):
        nd = arr.ndim
        return pl.BlockSpec(arr.shape, lambda b, vl, _nd=nd: (0,) * _nd)

    grid_spec = pltpu.PrefetchScalarGridSpec(
        num_scalar_prefetch=1,
        grid=(B,),
        in_specs=[pl.BlockSpec((1, S, H), lambda b, vl: (b, 0, 0))]
        + [full_spec(a) for a in ordered],
        out_specs=pl.BlockSpec((1, S, H), lambda b, vl: (b, 0, 0)),
    )

    # TODO(synk): at real BERT sizes, single-buffer the constant weight blocks
    # (pl.Buffered(1)) and/or prefetch the next layer's weights across calls.
    fn = pl.pallas_call(
        functools.partial(encoder_block_kernel, num_heads=num_heads),
        out_shape=jax.ShapeDtypeStruct((B, S, H), X.dtype),
        grid_spec=grid_spec,
        compiler_params=pltpu.CompilerParams(
            dimension_semantics=("parallel",),          # megacore batch sharding
            vmem_limit_bytes=48 * 1024 * 1024,          # safe on v5e/v6e/v7x
        ),
    )
    return fn(valid_lens.astype(jnp.int32), X, *ordered)


# ---------------------------------------------------------------------------
# Parameter init (deterministic, synthetic — mirrors the nn.Module shapes)
# ---------------------------------------------------------------------------
def init_params(key, vocab_size, num_hiddens, ffn_num_hiddens, num_heads,
                num_layers, max_len):
    H, F = num_hiddens, ffn_num_hiddens
    k_tok, k_seg, k_pos, k_layers = jax.random.split(key, 4)

    params = {
        "token_embedding": 0.02 * jax.random.normal(k_tok, (vocab_size, H), jnp.float32),
        "segment_embedding": 0.02 * jax.random.normal(k_seg, (2, H), jnp.float32),
        "pos_embedding": jax.random.normal(k_pos, (1, max_len, H), jnp.float32),  # torch.randn
        "layers": [],
    }

    for lk in jax.random.split(k_layers, num_layers):
        ks = jax.random.split(lk, 6)
        wq = 0.02 * jax.random.normal(ks[0], (H, H), jnp.float32)
        wk = 0.02 * jax.random.normal(ks[1], (H, H), jnp.float32)
        wv = 0.02 * jax.random.normal(ks[2], (H, H), jnp.float32)
        wo = 0.02 * jax.random.normal(ks[3], (H, H), jnp.float32)
        w1 = 0.02 * jax.random.normal(ks[4], (H, F), jnp.float32)
        w2 = 0.02 * jax.random.normal(ks[5], (F, H), jnp.float32)
        layer = {
            # Matmul weights stored bf16 (native MXU dtype, half the DMA).
            "wqkv": jnp.concatenate([wq, wk, wv], axis=1).astype(jnp.bfloat16),  # (H, 3H)
            "bqkv": jnp.zeros((1, 3 * H), jnp.float32),
            "wo": wo.astype(jnp.bfloat16),
            "bo": jnp.zeros((1, H), jnp.float32),
            "g1": jnp.ones((1, H), jnp.float32),
            "be1": jnp.zeros((1, H), jnp.float32),
            "w1": w1.astype(jnp.bfloat16),
            "b1": jnp.zeros((1, F), jnp.float32),
            "w2": w2.astype(jnp.bfloat16),
            "b2": jnp.zeros((1, H), jnp.float32),
            "g2": jnp.ones((1, H), jnp.float32),
            "be2": jnp.zeros((1, H), jnp.float32),
        }
        params["layers"].append(layer)
    return params


# ---------------------------------------------------------------------------
# Full BERTEncoder forward (embedding glue in plain JAX, blocks in Pallas)
# ---------------------------------------------------------------------------
def bert_encoder_forward(tokens, segments, valid_lens, params, num_heads):
    S = tokens.shape[1]
    X = params["token_embedding"][tokens] + params["segment_embedding"][segments]
    X = X + params["pos_embedding"][:, :S, :]
    # TODO(synk): dropout is treated as inference-mode identity (no RNG dropout).
    for layer in params["layers"]:
        X = encoder_block(X, valid_lens, layer, num_heads)
    return X


if __name__ == "__main__":
    vocab_size = 100
    num_hiddens = 32
    ffn_num_hiddens = 64
    num_heads = 4
    num_layers = 2
    max_len = 16
    B, S = 2, 8

    key = jax.random.PRNGKey(0)
    k_params, k_tok = jax.random.split(key)

    params = init_params(k_params, vocab_size, num_hiddens, ffn_num_hiddens,
                         num_heads, num_layers, max_len)

    tokens = jax.random.randint(k_tok, (B, S), 0, vocab_size, dtype=jnp.int32)
    segments = jnp.array([[0, 0, 0, 0, 1, 1, 1, 1],
                          [0, 0, 0, 1, 1, 1, 1, 1]], dtype=jnp.int32)
    valid_lens = jnp.array([8, 6], dtype=jnp.int32)

    out = bert_encoder_forward(tokens, segments, valid_lens, params, num_heads)
    jax.block_until_ready(out)
    assert out.shape == (B, S, num_hiddens)
    print("KERNEL_OK")
</pallas_src>

<mosaic_0001>
module attributes {stable_mosaic.version = 11 : i64} {
  func.func @encoder_block_kernel(%arg0: i32, %arg1: memref<2xi32, #tpu.memory_space<smem>>, %arg2: memref<1x8x32xf32, #tpu.memory_space<vmem>>, %arg3: memref<32x96xbf16, #tpu.memory_space<vmem>>, %arg4: memref<1x96xf32, #tpu.memory_space<vmem>>, %arg5: memref<32x32xbf16, #tpu.memory_space<vmem>>, %arg6: memref<1x32xf32, #tpu.memory_space<vmem>>, %arg7: memref<1x32xf32, #tpu.memory_space<vmem>>, %arg8: memref<1x32xf32, #tpu.memory_space<vmem>>, %arg9: memref<32x64xbf16, #tpu.memory_space<vmem>>, %arg10: memref<1x64xf32, #tpu.memory_space<vmem>>, %arg11: memref<64x32xbf16, #tpu.memory_space<vmem>>, %arg12: memref<1x32xf32, #tpu.memory_space<vmem>>, %arg13: memref<1x32xf32, #tpu.memory_space<vmem>>, %arg14: memref<1x32xf32, #tpu.memory_space<vmem>>, %arg15: memref<1x8x32xf32, #tpu.memory_space<vmem>>) attributes {dimension_semantics = [#tpu.dimension_semantics<parallel>], iteration_bounds = array<i64: 2>, scalar_prefetch = 1 : i64, scratch_operands = 0 : i64, tpu.core_type = #tpu.core_type<tc>, window_params = [{transform_indices = @transform_0, window_bounds = array<i64: 1, 8, 32>}, {pipeline_mode = #tpu.pipeline_mode<synchronous>, transform_indices = @transform_1, window_bounds = array<i64: 32, 96>}, {pipeline_mode = #tpu.pipeline_mode<synchronous>, transform_indices = @transform_2, window_bounds = array<i64: 1, 96>}, {pipeline_mode = #tpu.pipeline_mode<synchronous>, transform_indices = @transform_3, window_bounds = array<i64: 32, 32>}, {pipeline_mode = #tpu.pipeline_mode<synchronous>, transform_indices = @transform_4, window_bounds = array<i64: 1, 32>}, {pipeline_mode = #tpu.pipeline_mode<synchronous>, transform_indices = @transform_5, window_bounds = array<i64: 1, 32>}, {pipeline_mode = #tpu.pipeline_mode<synchronous>, transform_indices = @transform_6, window_bounds = array<i64: 1, 32>}, {pipeline_mode = #tpu.pipeline_mode<synchronous>, transform_indices = @transform_7, window_bounds = array<i64: 32, 64>}, {pipeline_mode = #tpu.pipeline_mode<synchronous>, transform_indices = @transform_8, window_bounds = array<i64: 1, 64>}, {pipeline_mode = #tpu.pipeline_mode<synchronous>, transform_indices = @transform_9, window_bounds = array<i64: 64, 32>}, {pipeline_mode = #tpu.pipeline_mode<synchronous>, transform_indices = @transform_10, window_bounds = array<i64: 1, 32>}, {pipeline_mode = #tpu.pipeline_mode<synchronous>, transform_indices = @transform_11, window_bounds = array<i64: 1, 32>}, {pipeline_mode = #tpu.pipeline_mode<synchronous>, transform_indices = @transform_12, window_bounds = array<i64: 1, 32>}, {transform_indices = @transform_13, window_bounds = array<i64: 1, 8, 32>}]} {
    %c0 = arith.constant 0 : index
    %c0_0 = arith.constant 0 : index
    %c0_1 = arith.constant 0 : index
    %0 = vector.load %arg2[%c0, %c0_0, %c0_1] : memref<1x8x32xf32, #tpu.memory_space<vmem>>, vector<1x8x32xf32>
    %1 = vector.shape_cast %0 : vector<1x8x32xf32> to vector<8x32xf32>
    %cst = arith.constant 8.000000e+00 : f32
    %2 = math.sqrt %cst : f32
    %cst_2 = arith.constant 1.000000e+00 : f32
    %3 = arith.divf %cst_2, %2 : f32
    %4 = arith.index_cast %arg0 : i32 to index
    %5 = memref.load %arg1[%4] : memref<2xi32, #tpu.memory_space<smem>>
    %6 = tpu.iota {dimensions = array<i32: 1>} : vector<1x8xi32>
    %7 = vector.broadcast %5 : i32 to vector<1x8xi32>
    %8 = arith.cmpi slt, %6, %7 : vector<1x8xi32>
    %cst_3 = arith.constant 0.000000e+00 : f32
    %cst_4 = arith.constant -1.000000e+06 : f32
    %9 = vector.broadcast %cst_3 : f32 to vector<1x8xf32>
    %10 = vector.broadcast %cst_4 : f32 to vector<1x8xf32>
    %11 = arith.select %8, %9, %10 : vector<1x8xi1>, vector<1x8xf32>
    %12 = arith.truncf %1 : vector<8x32xf32> to vector<8x32xbf16>
    %c0_5 = arith.constant 0 : index
    %c0_6 = arith.constant 0 : index
    %13 = vector.load %arg3[%c0_5, %c0_6] : memref<32x96xbf16, #tpu.memory_space<vmem>>, vector<32x96xbf16>
    %cst_7 = arith.constant dense<0.000000e+00> : vector<8x96xf32>
    %14 = tpu.matmul %12, %13, %cst_7 {dimension_numbers = #tpu.dot_dimension_numbers<[1], [0], [0], [1], [0, 0, 1, 1], [], []>} : vector<8x32xbf16>, vector<32x96xbf16>, vector<8x96xf32> -> vector<8x96xf32>
    %c0_8 = arith.constant 0 : index
    %c0_9 = arith.constant 0 : index
    %15 = vector.load %arg4[%c0_8, %c0_9] : memref<1x96xf32, #tpu.memory_space<vmem>>, vector<1x96xf32>
    %16 = vector.broadcast %15 : vector<1x96xf32> to vector<8x96xf32>
    %17 = arith.addf %14, %16 : vector<8x96xf32>
    %18 = vector.extract_strided_slice %17 {offsets = [0, 0], sizes = [8, 32], strides = [1, 1]} : vector<8x96xf32> to vector<8x32xf32>
    %19 = vector.extract_strided_slice %17 {offsets = [0, 32], sizes = [8, 32], strides = [1, 1]} : vector<8x96xf32> to vector<8x32xf32>
    %20 = vector.extract_strided_slice %17 {offsets = [0, 64], sizes = [8, 32], strides = [1, 1]} : vector<8x96xf32> to vector<8x32xf32>
    %21 = vector.shape_cast %18 : vector<8x32xf32> to vector<8x4x8xf32>
    %22 = tpu.transpose %21, [1, 0, 2] : vector<8x4x8xf32> -> vector<4x8x8xf32>
    %23 = arith.truncf %22 : vector<4x8x8xf32> to vector<4x8x8xbf16>
    %24 = vector.shape_cast %19 : vector<8x32xf32> to vector<8x4x8xf32>
    %25 = tpu.transpose %24, [1, 0, 2] : vector<8x4x8xf32> -> vector<4x8x8xf32>
    %26 = arith.truncf %25 : vector<4x8x8xf32> to vector<4x8x8xbf16>
    %27 = vector.shape_cast %20 : vector<8x32xf32> to vector<8x4x8xf32>
    %28 = tpu.transpose %27, [1, 0, 2] : vector<8x4x8xf32> -> vector<4x8x8xf32>
    %29 = arith.truncf %28 : vector<4x8x8xf32> to vector<4x8x8xbf16>
    "tpu.trace_start"() <{level = 10 : i32, message = "hqd,hkd->hqk"}> : () -> ()
    %cst_10 = arith.constant dense<0.000000e+00> : vector<4x8x8xf32>
    %30 = tpu.matmul %23, %26, %cst_10 {dimension_numbers = #tpu.dot_dimension_numbers<[2], [2], [1], [1], [0, 0, 0, 1, 1, 1], [0], [0]>} : vector<4x8x8xbf16>, vector<4x8x8xbf16>, vector<4x8x8xf32> -> vector<4x8x8xf32>
    "tpu.trace_stop"() : () -> ()
    %31 = vector.broadcast %3 : f32 to vector<4x8x8xf32>
    %32 = arith.mulf %30, %31 : vector<4x8x8xf32>
    %33 = vector.shape_cast %11 : vector<1x8xf32> to vector<1x1x8xf32>
    %34 = vector.broadcast %33 : vector<1x1x8xf32> to vector<4x8x8xf32>
    %35 = arith.addf %32, %34 : vector<4x8x8xf32>
    %cst_11 = arith.constant dense<0xFF800000> : vector<4x8xf32>
    %36 = vector.multi_reduction <maximumf>, %35, %cst_11 [2] : vector<4x8x8xf32> to vector<4x8xf32>
    %37 = vector.shape_cast %36 : vector<4x8xf32> to vector<4x8x1xf32>
    %38 = vector.broadcast %37 : vector<4x8x1xf32> to vector<4x8x8xf32>
    %39 = arith.subf %35, %38 : vector<4x8x8xf32>
    %40 = math.exp %39 : vector<4x8x8xf32>
    %cst_12 = arith.constant dense<0.000000e+00> : vector<4x8xf32>
    %41 = vector.multi_reduction <add>, %40, %cst_12 [2] : vector<4x8x8xf32> to vector<4x8xf32>
    %42 = vector.shape_cast %41 : vector<4x8xf32> to vector<4x8x1xf32>
    %43 = tpu.reciprocal %42 {approx = true} : vector<4x8x1xf32> -> vector<4x8x1xf32>
    %44 = vector.broadcast %43 : vector<4x8x1xf32> to vector<4x8x8xf32>
    %45 = arith.mulf %40, %44 : vector<4x8x8xf32>
    %46 = arith.truncf %45 : vector<4x8x8xf32> to vector<4x8x8xbf16>
    "tpu.trace_start"() <{level = 10 : i32, message = "hqk,hkd->hqd"}> : () -> ()
    %cst_13 = arith.constant dense<0.000000e+00> : vector<4x8x8xf32>
    %47 = tpu.matmul %46, %29, %cst_13 {dimension_numbers = #tpu.dot_dimension_numbers<[2], [1], [1], [2], [0, 0, 0, 1, 1, 2], [0], [0]>} : vector<4x8x8xbf16>, vector<4x8x8xbf16>, vector<4x8x8xf32> -> vector<4x8x8xf32>
    "tpu.trace_stop"() : () -> ()
    %48 = tpu.transpose %47, [1, 0, 2] : vector<4x8x8xf32> -> vector<8x4x8xf32>
    %49 = vector.shape_cast %48 : vector<8x4x8xf32> to vector<8x32xf32>
    %50 = arith.truncf %49 : vector<8x32xf32> to vector<8x32xbf16>
    %c0_14 = arith.constant 0 : index
    %c0_15 = arith.constant 0 : index
    %51 = vector.load %arg5[%c0_14, %c0_15] : memref<32x32xbf16, #tpu.memory_space<vmem>>, vector<32x32xbf16>
    %cst_16 = arith.constant dense<0.000000e+00> : vector<8x32xf32>
    %52 = tpu.matmul %50, %51, %cst_16 {dimension_numbers = #tpu.dot_dimension_numbers<[1], [0], [0], [1], [0, 0, 1, 1], [], []>} : vector<8x32xbf16>, vector<32x32xbf16>, vector<8x32xf32> -> vector<8x32xf32>
    %c0_17 = arith.constant 0 : index
    %c0_18 = arith.constant 0 : index
    %53 = vector.load %arg6[%c0_17, %c0_18] : memref<1x32xf32, #tpu.memory_space<vmem>>, vector<1x32xf32>
    %54 = vector.broadcast %53 : vector<1x32xf32> to vector<8x32xf32>
    %55 = arith.addf %52, %54 : vector<8x32xf32>
    %56 = arith.addf %1, %55 : vector<8x32xf32>
    %c0_19 = arith.constant 0 : index
    %c0_20 = arith.constant 0 : index
    %57 = vector.load %arg7[%c0_19, %c0_20] : memref<1x32xf32, #tpu.memory_space<vmem>>, vector<1x32xf32>
    %c0_21 = arith.constant 0 : index
    %c0_22 = arith.constant 0 : index
    %58 = vector.load %arg8[%c0_21, %c0_22] : memref<1x32xf32, #tpu.memory_space<vmem>>, vector<1x32xf32>
    %cst_23 = arith.constant dense<0.000000e+00> : vector<8xf32>
    %59 = vector.multi_reduction <add>, %56, %cst_23 [1] : vector<8x32xf32> to vector<8xf32>
    %60 = vector.shape_cast %59 : vector<8xf32> to vector<8x1xf32>
    %cst_24 = arith.constant 3.200000e+01 : f32
    %61 = vector.broadcast %cst_24 : f32 to vector<8x1xf32>
    %62 = arith.divf %60, %61 : vector<8x1xf32>
    %63 = vector.broadcast %62 : vector<8x1xf32> to vector<8x32xf32>
    %64 = arith.subf %56, %63 : vector<8x32xf32>
    %65 = arith.mulf %64, %64 : vector<8x32xf32>
    %cst_25 = arith.constant dense<0.000000e+00> : vector<8xf32>
    %66 = vector.multi_reduction <add>, %65, %cst_25 [1] : vector<8x32xf32> to vector<8xf32>
    %67 = vector.shape_cast %66 : vector<8xf32> to vector<8x1xf32>
    %cst_26 = arith.constant 3.200000e+01 : f32
    %68 = vector.broadcast %cst_26 : f32 to vector<8x1xf32>
    %69 = arith.divf %67, %68 : vector<8x1xf32>
    %70 = vector.broadcast %62 : vector<8x1xf32> to vector<8x32xf32>
    %71 = arith.subf %56, %70 : vector<8x32xf32>
    %cst_27 = arith.constant 9.99999974E-6 : f32
    %72 = vector.broadcast %cst_27 : f32 to vector<8x1xf32>
    %73 = arith.addf %69, %72 : vector<8x1xf32>
    %74 = math.rsqrt %73 : vector<8x1xf32>
    %75 = vector.broadcast %74 : vector<8x1xf32> to vector<8x32xf32>
    %76 = arith.mulf %71, %75 : vector<8x32xf32>
    %77 = vector.broadcast %57 : vector<1x32xf32> to vector<8x32xf32>
    %78 = arith.mulf %76, %77 : vector<8x32xf32>
    %79 = vector.broadcast %58 : vector<1x32xf32> to vector<8x32xf32>
    %80 = arith.addf %78, %79 : vector<8x32xf32>
    %81 = arith.truncf %80 : vector<8x32xf32> to vector<8x32xbf16>
    %c0_28 = arith.constant 0 : index
    %c0_29 = arith.constant 0 : index
    %82 = vector.load %arg9[%c0_28, %c0_29] : memref<32x64xbf16, #tpu.memory_space<vmem>>, vector<32x64xbf16>
    %cst_30 = arith.constant dense<0.000000e+00> : vector<8x64xf32>
    %83 = tpu.matmul %81, %82, %cst_30 {dimension_numbers = #tpu.dot_dimension_numbers<[1], [0], [0], [1], [0, 0, 1, 1], [], []>} : vector<8x32xbf16>, vector<32x64xbf16>, vector<8x64xf32> -> vector<8x64xf32>
    %c0_31 = arith.constant 0 : index
    %c0_32 = arith.constant 0 : index
    %84 = vector.load %arg10[%c0_31, %c0_32] : memref<1x64xf32, #tpu.memory_space<vmem>>, vector<1x64xf32>
    %85 = vector.broadcast %84 : vector<1x64xf32> to vector<8x64xf32>
    %86 = arith.addf %83, %85 : vector<8x64xf32>
    %cst_33 = arith.constant 0.000000e+00 : f32
    %87 = vector.broadcast %cst_33 : f32 to vector<8x64xf32>
    %88 = arith.maximumf %86, %87 : vector<8x64xf32>
    %89 = arith.truncf %88 : vector<8x64xf32> to vector<8x64xbf16>
    %c0_34 = arith.constant 0 : index
    %c0_35 = arith.constant 0 : index
    %90 = vector.load %arg11[%c0_34, %c0_35] : memref<64x32xbf16, #tpu.memory_space<vmem>>, vector<64x32xbf16>
    %cst_36 = arith.constant dense<0.000000e+00> : vector<8x32xf32>
    %91 = tpu.matmul %89, %90, %cst_36 {dimension_numbers = #tpu.dot_dimension_numbers<[1], [0], [0], [1], [0, 0, 1, 1], [], []>} : vector<8x64xbf16>, vector<64x32xbf16>, vector<8x32xf32> -> vector<8x32xf32>
    %c0_37 = arith.constant 0 : index
    %c0_38 = arith.constant 0 : index
    %92 = vector.load %arg12[%c0_37, %c0_38] : memref<1x32xf32, #tpu.memory_space<vmem>>, vector<1x32xf32>
    %93 = vector.broadcast %92 : vector<1x32xf32> to vector<8x32xf32>
    %94 = arith.addf %91, %93 : vector<8x32xf32>
    %95 = arith.addf %80, %94 : vector<8x32xf32>
    %c0_39 = arith.constant 0 : index
    %c0_40 = arith.constant 0 : index
    %96 = vector.load %arg13[%c0_39, %c0_40] : memref<1x32xf32, #tpu.memory_space<vmem>>, vector<1x32xf32>
    %c0_41 = arith.constant 0 : index
    %c0_42 = arith.constant 0 : index
    %97 = vector.load %arg14[%c0_41, %c0_42] : memref<1x32xf32, #tpu.memory_space<vmem>>, vector<1x32xf32>
    %cst_43 = arith.constant dense<0.000000e+00> : vector<8xf32>
    %98 = vector.multi_reduction <add>, %95, %cst_43 [1] : vector<8x32xf32> to vector<8xf32>
    %99 = vector.shape_cast %98 : vector<8xf32> to vector<8x1xf32>
    %cst_44 = arith.constant 3.200000e+01 : f32
    %100 = vector.broadcast %cst_44 : f32 to vector<8x1xf32>
    %101 = arith.divf %99, %100 : vector<8x1xf32>
    %102 = vector.broadcast %101 : vector<8x1xf32> to vector<8x32xf32>
    %103 = arith.subf %95, %102 : vector<8x32xf32>
    %104 = arith.mulf %103, %103 : vector<8x32xf32>
    %cst_45 = arith.constant dense<0.000000e+00> : vector<8xf32>
    %105 = vector.multi_reduction <add>, %104, %cst_45 [1] : vector<8x32xf32> to vector<8xf32>
    %106 = vector.shape_cast %105 : vector<8xf32> to vector<8x1xf32>
    %cst_46 = arith.constant 3.200000e+01 : f32
    %107 = vector.broadcast %cst_46 : f32 to vector<8x1xf32>
    %108 = arith.divf %106, %107 : vector<8x1xf32>
    %109 = vector.broadcast %101 : vector<8x1xf32> to vector<8x32xf32>
    %110 = arith.subf %95, %109 : vector<8x32xf32>
    %cst_47 = arith.constant 9.99999974E-6 : f32
    %111 = vector.broadcast %cst_47 : f32 to vector<8x1xf32>
    %112 = arith.addf %108, %111 : vector<8x1xf32>
    %113 = math.rsqrt %112 : vector<8x1xf32>
    %114 = vector.broadcast %113 : vector<8x1xf32> to vector<8x32xf32>
    %115 = arith.mulf %110, %114 : vector<8x32xf32>
    %116 = vector.broadcast %96 : vector<1x32xf32> to vector<8x32xf32>
    %117 = arith.mulf %115, %116 : vector<8x32xf32>
    %118 = vector.broadcast %97 : vector<1x32xf32> to vector<8x32xf32>
    %119 = arith.addf %117, %118 : vector<8x32xf32>
    %c0_48 = arith.constant 0 : index
    %c0_49 = arith.constant 0 : index
    %c0_50 = arith.constant 0 : index
    %120 = vector.load %arg15[%c0_48, %c0_49, %c0_50] : memref<1x8x32xf32, #tpu.memory_space<vmem>>, vector<1x8x32xf32>
    %121 = vector.shape_cast %120 : vector<1x8x32xf32> to vector<8x32xf32>
    %122 = vector.shape_cast %119 : vector<8x32xf32> to vector<1x8x32xf32>
    tpu.vector_store %arg15[%c0_48, %c0_49, %c0_50], %122 {strides = array<i32>} : memref<1x8x32xf32, #tpu.memory_space<vmem>>, vector<1x8x32xf32>,
    return
  }
  func.func @transform_0(%arg0: i32, %arg1: memref<2xi32, #tpu.memory_space<smem>>) -> (i32, i32, i32) {
    %c0_i32 = arith.constant 0 : i32
    %c0_i32_0 = arith.constant 0 : i32
    %c0_i32_1 = arith.constant 0 : i32
    return %arg0, %c0_i32, %c0_i32_0 : i32, i32, i32
  }
  func.func @transform_1(%arg0: i32, %arg1: memref<2xi32, #tpu.memory_space<smem>>) -> (i32, i32) {
    %c0_i32 = arith.constant 0 : i32
    %c0_i32_0 = arith.constant 0 : i32
    %c0_i32_1 = arith.constant 0 : i32
    return %c0_i32, %c0_i32_0 : i32, i32
  }
  func.func @transform_2(%arg0: i32, %arg1: memref<2xi32, #tpu.memory_space<smem>>) -> (i32, i32) {
    %c0_i32 = arith.constant 0 : i32
    %c0_i32_0 = arith.constant 0 : i32
    %c0_i32_1 = arith.constant 0 : i32
    return %c0_i32, %c0_i32_0 : i32, i32
  }
  func.func @transform_3(%arg0: i32, %arg1: memref<2xi32, #tpu.memory_space<smem>>) -> (i32, i32) {
    %c0_i32 = arith.constant 0 : i32
    %c0_i32_0 = arith.constant 0 : i32
    %c0_i32_1 = arith.constant 0 : i32
    return %c0_i32, %c0_i32_0 : i32, i32
  }
  func.func @transform_4(%arg0: i32, %arg1: memref<2xi32, #tpu.memory_space<smem>>) -> (i32, i32) {
    %c0_i32 = arith.constant 0 : i32
    %c0_i32_0 = arith.constant 0 : i32
    %c0_i32_1 = arith.constant 0 : i32
    return %c0_i32, %c0_i32_0 : i32, i32
  }
  func.func @transform_5(%arg0: i32, %arg1: memref<2xi32, #tpu.memory_space<smem>>) -> (i32, i32) {
    %c0_i32 = arith.constant 0 : i32
    %c0_i32_0 = arith.constant 0 : i32
    %c0_i32_1 = arith.constant 0 : i32
    return %c0_i32, %c0_i32_0 : i32, i32
  }
  func.func @transform_6(%arg0: i32, %arg1: memref<2xi32, #tpu.memory_space<smem>>) -> (i32, i32) {
    %c0_i32 = arith.constant 0 : i32
    %c0_i32_0 = arith.constant 0 : i32
    %c0_i32_1 = arith.constant 0 : i32
    return %c0_i32, %c0_i32_0 : i32, i32
  }
  func.func @transform_7(%arg0: i32, %arg1: memref<2xi32, #tpu.memory_space<smem>>) -> (i32, i32) {
    %c0_i32 = arith.constant 0 : i32
    %c0_i32_0 = arith.constant 0 : i32
    %c0_i32_1 = arith.constant 0 : i32
    return %c0_i32, %c0_i32_0 : i32, i32
  }
  func.func @transform_8(%arg0: i32, %arg1: memref<2xi32, #tpu.memory_space<smem>>) -> (i32, i32) {
    %c0_i32 = arith.constant 0 : i32
    %c0_i32_0 = arith.constant 0 : i32
    %c0_i32_1 = arith.constant 0 : i32
    return %c0_i32, %c0_i32_0 : i32, i32
  }
  func.func @transform_9(%arg0: i32, %arg1: memref<2xi32, #tpu.memory_space<smem>>) -> (i32, i32) {
    %c0_i32 = arith.constant 0 : i32
    %c0_i32_0 = arith.constant 0 : i32
    %c0_i32_1 = arith.constant 0 : i32
    return %c0_i32, %c0_i32_0 : i32, i32
  }
  func.func @transform_10(%arg0: i32, %arg1: memref<2xi32, #tpu.memory_space<smem>>) -> (i32, i32) {
    %c0_i32 = arith.constant 0 : i32
    %c0_i32_0 = arith.constant 0 : i32
    %c0_i32_1 = arith.constant 0 : i32
    return %c0_i32, %c0_i32_0 : i32, i32
  }
  func.func @transform_11(%arg0: i32, %arg1: memref<2xi32, #tpu.memory_space<smem>>) -> (i32, i32) {
    %c0_i32 = arith.constant 0 : i32
    %c0_i32_0 = arith.constant 0 : i32
    %c0_i32_1 = arith.constant 0 : i32
    return %c0_i32, %c0_i32_0 : i32, i32
  }
  func.func @transform_12(%arg0: i32, %arg1: memref<2xi32, #tpu.memory_space<smem>>) -> (i32, i32) {
    %c0_i32 = arith.constant 0 : i32
    %c0_i32_0 = arith.constant 0 : i32
    %c0_i32_1 = arith.constant 0 : i32
    return %c0_i32, %c0_i32_0 : i32, i32
  }
  func.func @transform_13(%arg0: i32, %arg1: memref<2xi32, #tpu.memory_space<smem>>) -> (i32, i32, i32) {
    %c0_i32 = arith.constant 0 : i32
    %c0_i32_0 = arith.constant 0 : i32
    %c0_i32_1 = arith.constant 0 : i32
    return %arg0, %c0_i32, %c0_i32_0 : i32, i32, i32
  }
}

</mosaic_0001>

<llo_original>
// kernel: tpu_custom_call.1
$region0: #{tpu_custom_call.1}
  #allocation0 [shape = 'u32[]', space=smem, size = 0x4, offset = 0x4, fixed_abs, tag = 'smem constant byte address 0x4 - core index']
  #allocation1 [shape = 'u32[144,128]{1,0:T(1,128)}', space=vmem, size = 0x12000, scoped, tag = 'internal scratch']
  #allocation2 [shape = 's32[1]{0}', space=sflag, size = 0x4, scoped, tag = 'scoped memory for tpu_custom_call.1']
  #allocation3 [shape = 'u8[512]{0}', space=smem, size = 0x200, scoped, tag = 'prefetched SMEM operand 0']
  %s0 = inlined_call_operand.hbm [shape: s32[2], index: 0, kind: input, shape index: {}]
  %s1 = inlined_call_operand.vmem [shape: f32[2,8,32], index: 1, kind: input, shape index: {}]
  %s2 = inlined_call_operand.vmem [shape: bf16[32,96], index: 2, kind: input, shape index: {}]
  %s3 = inlined_call_operand.vmem [shape: f32[1,96], index: 3, kind: input, shape index: {}]
  %s4 = inlined_call_operand.vmem [shape: bf16[32,32], index: 4, kind: input, shape index: {}]
  %s5 = inlined_call_operand.vmem [shape: f32[1,32], index: 5, kind: input, shape index: {}]
  %s6 = inlined_call_operand.hbm [shape: f32[1,32], index: 6, kind: input, shape index: {}]
  %s7 = inlined_call_operand.hbm [shape: f32[1,32], index: 7, kind: input, shape index: {}]
  %s8 = inlined_call_operand.hbm [shape: bf16[32,64], index: 8, kind: input, shape index: {}]
  %s9 = inlined_call_operand.hbm [shape: f32[1,64], index: 9, kind: input, shape index: {}]
  %s10 = inlined_call_operand.vmem [shape: bf16[64,32], index: 10, kind: input, shape index: {}]
  %s11 = inlined_call_operand.vmem [shape: f32[1,32], index: 11, kind: input, shape index: {}]
  %s12 = inlined_call_operand.vmem [shape: f32[1,32], index: 12, kind: input, shape index: {}]
  %s13 = inlined_call_operand.vmem [shape: f32[1,32], index: 13, kind: input, shape index: {}]
  %s14 = inlined_call_operand.hbm [shape: f32[2,8,32], index: 14, kind: output, shape index: {}]
  %s15 = sld [smem:[#allocation0]]
  $region101: #{tpu_custom_call.1} parent=0
    _
  %s17 = ssub.s32 1, %s15
  %s18 = scalar_select 0, %s17, %s15
  %20 = dma.hbm_to_smem %s0, 16, [#allocation3], [#allocation2]
  %21 = dma.done [#allocation2], 16
  %22 = sfence
  $region1: #{tpu_custom_call.1} parent=0
    #allocation4 [shape = 'u8[512]{0}', space=vmem, size = 0x400, scoped, tag = 'input window, operand 6, single buffered']
    #allocation5 [shape = 's32[2]{0}', space=sflag, size = 0x8, scoped, tag = 'scoped memory for tpu_custom_call.1']
    #allocation6 [shape = 's32[2]{0}', space=sflag, size = 0x8, scoped, tag = 'scoped memory for tpu_custom_call.1']
    #allocation7 [shape = 'u8[512]{0}', space=vmem, size = 0x400, scoped, tag = 'input window, operand 7, single buffered']
    #allocation8 [shape = 's32[1]{0}', space=sflag, size = 0x4, scoped, tag = 'scoped memory for tpu_custom_call.1']
    #allocation9 [shape = 'u8[8192]{0}', space=vmem, size = 0x2000, scoped, tag = 'input window, operand 8, single buffered']
    #allocation10 [shape = 'u8[512]{0}', space=vmem, size = 0x400, scoped, tag = 'input window, operand 9, single buffered']
    #allocation11 [shape = 's32[1]{0}', space=sflag, size = 0x4, scoped, tag = 'scoped memory for tpu_custom_call.1']
    #allocation12 [shape = 'u8[8192]{0}', space=vmem, size = 0x2000, scoped, tag = 'output window, operand 0']
    %23 = vsyncpa [#allocation5], 0
    %24 = vsyncpa [#allocation8], 0
    %25 = vsyncpa [#allocation11], 0
    %26 = vsyncpa [#allocation6], 0
    %s27 = scalar_lea.sflag [#allocation6], 1
    %28 = vsyncpa %s27, 0
    loop: start=0, step=1, limit=4
    $region2: #{tpu_custom_call.1} parent=1 // loop_pre_header
      _
    $region3: #{tpu_custom_call.1} parent=1 // loop_header
      %s30 = sphi 0, %s34
      %p31 = scmp.ge.s32.totalorder %s30, 4
      %s40 = sphi 0, %s42
      %s43 = sphi 0, %s40
      %s44 = sphi 0, %s43
      %s60 = sphi 0, %s44
      %s64 = sphi 0, %s64
      %s66 = sphi 0, %s64
      %s67 = sphi 0, %s66
      %s81 = sphi 0, %s67
      %s85 = sphi 0, %s85
      %s87 = sphi 0, %s85
      %s88 = sphi 0, %s87
      %s102 = sphi 0, %s88
      %s106 = sphi 0, %s106
      %s108 = sphi 0, %s106
      %s109 = sphi 0, %s108
      %s123 = sphi 0, %s109
      %s127 = sphi 0, %s127
      %s129 = sphi 0, %s127
      %s130 = sphi 0, %s129
      %s144 = sphi 0, %s130
      %s148 = sphi 0, %s148
      %s150 = sphi 0, %s148
      %s151 = sphi 0, %s150
      %s165 = sphi 0, %s151
      %s169 = sphi 0, %s169
      %s171 = sphi 0, %s169
      %s172 = sphi 0, %s171
      %s186 = sphi 0, %s172
      %s190 = sphi 0, %s190
      %s192 = sphi 0, %s190
      %s193 = sphi 0, %s192
      %s207 = sphi 0, %s193
      %s211 = sphi 0, %s211
      %s213 = sphi 0, %s211
      %s214 = sphi 0, %s213
      %s228 = sphi 0, %s214
      %s232 = sphi 0, %s232
      %s234 = sphi 0, %s232
      %s235 = sphi 0, %s234
      %s249 = sphi 0, %s235
      %s253 = sphi 0, %s253
      %s255 = sphi 0, %s253
      %s256 = sphi 0, %s255
      %s270 = sphi 0, %s256
      %s274 = sphi 0, %s274
      %s276 = sphi 0, %s274
      %s277 = sphi 0, %s276
      %s291 = sphi 0, %s277
      %s295 = sphi 0, %s295
      %s297 = sphi 0, %s295
      %s298 = sphi 0, %s297
      %s312 = sphi 0, %s298
      %s318 = sphi 0, %s320
      %s321 = sphi 0, %s318
      %s322 = sphi 0, %s321
      %s338 = sphi 0, %s322
    $region4: #{tpu_custom_call.1} parent=1 // loop_header_branch
      %33 = sbr.rel (%p31) target = $region8
    $region5: #{tpu_custom_call.1} parent=1 // loop_body
      %s35 = ssub.s32 %s30, 1
      %s36 = ssub.s32 %s30, 2
      %s37 = sadd.s32 %s30, 1
      %s38 = ssub.s32 %s30, %s37
      %p39 = scmp.eq.s32.totalorder %s38, 0
      %s41 = sadd.s32 %s40, 1
      %s42 = scalar_select %p39, %s40, %s41
      %p45 = pneg %p39
      %p46 = scmp.eq.s32.totalorder %s30, 1
      %p47 = por %p45, %p46
      %p48 = scmp.ne.s32.totalorder %s40, %s43
      %p49 = scmp.eq.s32.totalorder %s30, 0
      %p50 = por %p48, %p49
      %p51 = scmp.ne.s32.totalorder %s40, %s43
      %p52 = scmp.eq.s32.totalorder %s35, 1
      %p53 = por %p51, %p52
      %p54 = scmp.ne.s32.totalorder %s43, %s44
      %p55 = scmp.eq.s32.totalorder %s35, 0
      %p56 = por %p54, %p55
      %p57 = scmp.ne.s32.totalorder %s43, %s44
      %p58 = scmp.eq.s32.totalorder %s36, 1
      %p59 = por %p57, %p58
      %p61 = scmp.ne.s32.totalorder %s44, %s60
      %p62 = scmp.eq.s32.totalorder %s36, 0
      %p63 = por %p61, %p62
      %s65 = sadd.s32 %s64, 1
      %p68 = scmp.eq.s32.totalorder %s30, 1
      %p69 = scmp.ne.s32.totalorder %s64, %s66
      %p70 = scmp.eq.s32.totalorder %s30, 0
      %p71 = por %p69, %p70
      %p72 = scmp.ne.s32.totalorder %s64, %s66
      %p73 = scmp.eq.s32.totalorder %s35, 1
      %p74 = por %p72, %p73
      %p75 = scmp.ne.s32.totalorder %s66, %s67
      %p76 = scmp.eq.s32.totalorder %s35, 0
      %p77 = por %p75, %p76
      %p78 = scmp.ne.s32.totalorder %s66, %s67
      %p79 = scmp.eq.s32.totalorder %s36, 1
      %p80 = por %p78, %p79
      %p82 = scmp.ne.s32.totalorder %s67, %s81
      %p83 = scmp.eq.s32.totalorder %s36, 0
      %p84 = por %p82, %p83
      %s86 = sadd.s32 %s85, 1
      %p89 = scmp.eq.s32.totalorder %s30, 1
      %p90 = scmp.ne.s32.totalorder %s85, %s87
      %p91 = scmp.eq.s32.totalorder %s30, 0
      %p92 = por %p90, %p91
      %p93 = scmp.ne.s32.totalorder %s85, %s87
      %p94 = scmp.eq.s32.totalorder %s35, 1
      %p95 = por %p93, %p94
      %p96 = scmp.ne.s32.totalorder %s87, %s88
      %p97 = scmp.eq.s32.totalorder %s35, 0
      %p98 = por %p96, %p97
      %p99 = scmp.ne.s32.totalorder %s87, %s88
      %p100 = scmp.eq.s32.totalorder %s36, 1
      %p101 = por %p99, %p100
      %p103 = scmp.ne.s32.totalorder %s88, %s102
      %p104 = scmp.eq.s32.totalorder %s36, 0
      %p105 = por %p103, %p104
      %s107 = sadd.s32 %s106, 1
      %p110 = scmp.eq.s32.totalorder %s30, 1
      %p111 = scmp.ne.s32.totalorder %s106, %s108
      %p112 = scmp.eq.s32.totalorder %s30, 0
      %p113 = por %p111, %p112
      %p114 = scmp.ne.s32.totalorder %s106, %s108
      %p115 = scmp.eq.s32.totalorder %s35, 1
      %p116 = por %p114, %p115
      %p117 = scmp.ne.s32.totalorder %s108, %s109
      %p118 = scmp.eq.s32.totalorder %s35, 0
      %p119 = por %p117, %p118
      %p120 = scmp.ne.s32.totalorder %s108, %s109
      %p121 = scmp.eq.s32.totalorder %s36, 1
      %p122 = por %p120, %p121
      %p124 = scmp.ne.s32.totalorder %s109, %s123
      %p125 = scmp.eq.s32.totalorder %s36, 0
      %p126 = por %p124, %p125
      %s128 = sadd.s32 %s127, 1
      %p131 = scmp.eq.s32.totalorder %s30, 1
      %p132 = scmp.ne.s32.totalorder %s127, %s129
      %p133 = scmp.eq.s32.totalorder %s30, 0
      %p134 = por %p132, %p133
      %p135 = scmp.ne.s32.totalorder %s127, %s129
      %p136 = scmp.eq.s32.totalorder %s35, 1
      %p137 = por %p135, %p136
      %p138 = scmp.ne.s32.totalorder %s129, %s130
      %p139 = scmp.eq.s32.totalorder %s35, 0
      %p140 = por %p138, %p139
      %p141 = scmp.ne.s32.totalorder %s129, %s130
      %p142 = scmp.eq.s32.totalorder %s36, 1
      %p143 = por %p141, %p142
      %p145 = scmp.ne.s32.totalorder %s130, %s144
      %p146 = scmp.eq.s32.totalorder %s36, 0
      %p147 = por %p145, %p146
      %s149 = sadd.s32 %s148, 1
      %p152 = scmp.eq.s32.totalorder %s30, 1
      %p153 = scmp.ne.s32.totalorder %s148, %s150
      %p154 = scmp.eq.s32.totalorder %s30, 0
      %p155 = por %p153, %p154
      %p156 = scmp.ne.s32.totalorder %s148, %s150
      %p157 = scmp.eq.s32.totalorder %s35, 1
      %p158 = por %p156, %p157
      %p159 = scmp.ne.s32.totalorder %s150, %s151
      %p160 = scmp.eq.s32.totalorder %s35, 0
      %p161 = por %p159, %p160
      %p162 = scmp.ne.s32.totalorder %s150, %s151
      %p163 = scmp.eq.s32.totalorder %s36, 1
      %p164 = por %p162, %p163
      %p166 = scmp.ne.s32.totalorder %s151, %s165
      %p167 = scmp.eq.s32.totalorder %s36, 0
      %p168 = por %p166, %p167
      %s170 = sadd.s32 %s169, 1
      %p173 = scmp.eq.s32.totalorder %s30, 1
      %p174 = scmp.ne.s32.totalorder %s169, %s171
      %p175 = scmp.eq.s32.totalorder %s30, 0
      %p176 = por %p174, %p175
      %p177 = scmp.ne.s32.totalorder %s169, %s171
      %p178 = scmp.eq.s32.totalorder %s35, 1
      %p179 = por %p177, %p178
      %p180 = scmp.ne.s32.totalorder %s171, %s172
      %p181 = scmp.eq.s32.totalorder %s35, 0
      %p182 = por %p180, %p181
      %p183 = scmp.ne.s32.totalorder %s171, %s172
      %p184 = scmp.eq.s32.totalorder %s36, 1
      %p185 = por %p183, %p184
      %p187 = scmp.ne.s32.totalorder %s172, %s186
      %p188 = scmp.eq.s32.totalorder %s36, 0
      %p189 = por %p187, %p188
      %s191 = sadd.s32 %s190, 1
      %p194 = scmp.eq.s32.totalorder %s30, 1
      %p195 = scmp.ne.s32.totalorder %s190, %s192
      %p196 = scmp.eq.s32.totalorder %s30, 0
      %p197 = por %p195, %p196
      %p198 = scmp.ne.s32.totalorder %s190, %s192
      %p199 = scmp.eq.s32.totalorder %s35, 1
      %p200 = por %p198, %p199
      %p201 = scmp.ne.s32.totalorder %s192, %s193
      %p202 = scmp.eq.s32.totalorder %s35, 0
      %p203 = por %p201, %p202
      %p204 = scmp.ne.s32.totalorder %s192, %s193
      %p205 = scmp.eq.s32.totalorder %s36, 1
      %p206 = por %p204, %p205
      %p208 = scmp.ne.s32.totalorder %s193, %s207
      %p209 = scmp.eq.s32.totalorder %s36, 0
      %p210 = por %p208, %p209
      %s212 = sadd.s32 %s211, 1
      %p215 = scmp.eq.s32.totalorder %s30, 1
      %p216 = scmp.ne.s32.totalorder %s211, %s213
      %p217 = scmp.eq.s32.totalorder %s30, 0
      %p218 = por %p216, %p217
      %p219 = scmp.ne.s32.totalorder %s211, %s213
      %p220 = scmp.eq.s32.totalorder %s35, 1
      %p221 = por %p219, %p220
      %p222 = scmp.ne.s32.totalorder %s213, %s214
      %p223 = scmp.eq.s32.totalorder %s35, 0
      %p224 = por %p222, %p223
      %p225 = scmp.ne.s32.totalorder %s213, %s214
      %p226 = scmp.eq.s32.totalorder %s36, 1
      %p227 = por %p225, %p226
      %p229 = scmp.ne.s32.totalorder %s214, %s228
      %p230 = scmp.eq.s32.totalorder %s36, 0
      %p231 = por %p229, %p230
      %s233 = sadd.s32 %s232, 1
      %p236 = scmp.eq.s32.totalorder %s30, 1
      %p237 = scmp.ne.s32.totalorder %s232, %s234
      %p238 = scmp.eq.s32.totalorder %s30, 0
      %p239 = por %p237, %p238
      %p240 = scmp.ne.s32.totalorder %s232, %s234
      %p241 = scmp.eq.s32.totalorder %s35, 1
      %p242 = por %p240, %p241
      %p243 = scmp.ne.s32.totalorder %s234, %s235
      %p244 = scmp.eq.s32.totalorder %s35, 0
      %p245 = por %p243, %p244
      %p246 = scmp.ne.s32.totalorder %s234, %s235
      %p247 = scmp.eq.s32.totalorder %s36, 1
      %p248 = por %p246, %p247
      %p250 = scmp.ne.s32.totalorder %s235, %s249
      %p251 = scmp.eq.s32.totalorder %s36, 0
      %p252 = por %p250, %p251
      %s254 = sadd.s32 %s253, 1
      %p257 = scmp.eq.s32.totalorder %s30, 1
      %p258 = scmp.ne.s32.totalorder %s253, %s255
      %p259 = scmp.eq.s32.totalorder %s30, 0
      %p260 = por %p258, %p259
      %p261 = scmp.ne.s32.totalorder %s253, %s255
      %p262 = scmp.eq.s32.totalorder %s35, 1
      %p263 = por %p261, %p262
      %p264 = scmp.ne.s32.totalorder %s255, %s256
      %p265 = scmp.eq.s32.totalorder %s35, 0
      %p266 = por %p264, %p265
      %p267 = scmp.ne.s32.totalorder %s255, %s256
      %p268 = scmp.eq.s32.totalorder %s36, 1
      %p269 = por %p267, %p268
      %p271 = scmp.ne.s32.totalorder %s256, %s270
      %p272 = scmp.eq.s32.totalorder %s36, 0
      %p273 = por %p271, %p272
      %s275 = sadd.s32 %s274, 1
      %p278 = scmp.eq.s32.totalorder %s30, 1
      %p279 = scmp.ne.s32.totalorder %s274, %s276
      %p280 = scmp.eq.s32.totalorder %s30, 0
      %p281 = por %p279, %p280
      %p282 = scmp.ne.s32.totalorder %s274, %s276
      %p283 = scmp.eq.s32.totalorder %s35, 1
      %p284 = por %p282, %p283
      %p285 = scmp.ne.s32.totalorder %s276, %s277
      %p286 = scmp.eq.s32.totalorder %s35, 0
      %p287 = por %p285, %p286
      %p288 = scmp.ne.s32.totalorder %s276, %s277
      %p289 = scmp.eq.s32.totalorder %s36, 1
      %p290 = por %p288, %p289
      %p292 = scmp.ne.s32.totalorder %s277, %s291
      %p293 = scmp.eq.s32.totalorder %s36, 0
      %p294 = por %p292, %p293
      %s296 = sadd.s32 %s295, 1
      %p299 = scmp.eq.s32.totalorder %s30, 1
      %p300 = scmp.ne.s32.totalorder %s295, %s297
      %p301 = scmp.eq.s32.totalorder %s30, 0
      %p302 = por %p300, %p301
      %p303 = scmp.ne.s32.totalorder %s295, %s297
      %p304 = scmp.eq.s32.totalorder %s35, 1
      %p305 = por %p303, %p304
      %p306 = scmp.ne.s32.totalorder %s297, %s298
      %p307 = scmp.eq.s32.totalorder %s35, 0
      %p308 = por %p306, %p307
      %p309 = scmp.ne.s32.totalorder %s297, %s298
      %p310 = scmp.eq.s32.totalorder %s36, 1
      %p311 = por %p309, %p310
      %p313 = scmp.ne.s32.totalorder %s298, %s312
      %p314 = scmp.eq.s32.totalorder %s36, 0
      %p315 = por %p313, %p314
      %s316 = ssub.s32 %s30, %s37
      %p317 = scmp.eq.s32.totalorder %s316, 0
      %s319 = sadd.s32 %s318, 1
      %s320 = scalar_select %p317, %s318, %s319
      %p323 = pneg %p317
      %p324 = scmp.eq.s32.totalorder %s30, 1
      %p325 = por %p323, %p324
      %p326 = scmp.ne.s32.totalorder %s318, %s321
      %p327 = scmp.eq.s32.totalorder %s30, 0
      %p328 = por %p326, %p327
      %p329 = scmp.ne.s32.totalorder %s318, %s321
      %p330 = scmp.eq.s32.totalorder %s35, 1
      %p331 = por %p329, %p330
      %p332 = scmp.ne.s32.totalorder %s321, %s322
      %p333 = scmp.eq.s32.totalorder %s35, 0
      %p334 = por %p332, %p333
      %p335 = scmp.ne.s32.totalorder %s321, %s322
      %p336 = scmp.eq.s32.totalorder %s36, 1
      %p337 = por %p335, %p336
      %p339 = scmp.ne.s32.totalorder %s322, %s338
      %p340 = scmp.eq.s32.totalorder %s36, 0
      %p341 = por %p339, %p340
      %p342 = scmp.le.s32.totalorder 1, %s30
      %p343 = scmp.lt.s32.totalorder %s30, 3
      %p344 = pnand %p342, %p343
      %p345 = pneg %p344
      // Predicated region
      $region9: #{tpu_custom_call.1} parent=5 // pred_check
        _
      $region10: #{tpu_custom_call.1} parent=5 // pred_check_branch
        %347 = sbr.rel (%p344) target = $region12
      $region11: #{tpu_custom_call.1} parent=5 // pred_region
        %s348 = ssub.s32 %s30, 1
        // Predicated region
        $region13: #{tpu_custom_call.1} parent=11 // pred_check
          %p349 = pneg %p77
        $region14: #{tpu_custom_call.1} parent=11 // pred_check_branch
          %351 = sbr.rel (%p349) target = $region16
        $region15: #{tpu_custom_call.1} parent=11 // pred_region
          _
        $region16: #{tpu_custom_call.1} parent=11 // pred_fallthru
          _
        // Predicated region
        $region17: #{tpu_custom_call.1} parent=11 // pred_check
          %p352 = pneg %p98
        $region18: #{tpu_custom_call.1} parent=11 // pred_check_branch
          %354 = sbr.rel (%p352) target = $region20
        $region19: #{tpu_custom_call.1} parent=11 // pred_region
          _
        $region20: #{tpu_custom_call.1} parent=11 // pred_fallthru
          _
        // Predicated region
        $region21: #{tpu_custom_call.1} parent=11 // pred_check
          %p355 = pneg %p119
        $region22: #{tpu_custom_call.1} parent=11 // pred_check_branch
          %357 = sbr.rel (%p355) target = $region24
        $region23: #{tpu_custom_call.1} parent=11 // pred_region
          _
        $region24: #{tpu_custom_call.1} parent=11 // pred_fallthru
          _
        // Predicated region
        $region25: #{tpu_custom_call.1} parent=11 // pred_check
          %p358 = pneg %p140
        $region26: #{tpu_custom_call.1} parent=11 // pred_check_branch
          %360 = sbr.rel (%p358) target = $region28
        $region27: #{tpu_custom_call.1} parent=11 // pred_region
          _
        $region28: #{tpu_custom_call.1} parent=11 // pred_fallthru
          _
        // Predicated region
        $region29: #{tpu_custom_call.1} parent=11 // pred_check
          %p361 = pneg %p161
        $region30: #{tpu_custom_call.1} parent=11 // pred_check_branch
          %363 = sbr.rel (%p361) target = $region32
        $region31: #{tpu_custom_call.1} parent=11 // pred_region
          %s365 = ssub.s32 16, 16
          %366 = vsyncadd [#allocation5], %s365
          %s368 = sshll.u32 [#allocation4], 4
          %s369 = int_to_ptr.vmem [resolvable:$true] %s368
          %371 = dma.hbm_to_vmem [thread:$0]  %s6, 16, %s369, [#allocation5]
        $region32: #{tpu_custom_call.1} parent=11 // pred_fallthru
          _
        // Predicated region
        $region33: #{tpu_custom_call.1} parent=11 // pred_check
          %p372 = pneg %p182
        $region34: #{tpu_custom_call.1} parent=11 // pred_check_branch
          %374 = sbr.rel (%p372) target = $region36
        $region35: #{tpu_custom_call.1} parent=11 // pred_region
          %s376 = ssub.s32 16, 16
          %377 = vsyncadd [#allocation8], %s376
          %s379 = sshll.u32 [#allocation7], 4
          %s380 = int_to_ptr.vmem [resolvable:$true] %s379
          %382 = dma.hbm_to_vmem [thread:$0]  %s7, 16, %s380, [#allocation8]
        $region36: #{tpu_custom_call.1} parent=11 // pred_fallthru
          _
        // Predicated region
        $region37: #{tpu_custom_call.1} parent=11 // pred_check
          %p383 = pneg %p203
        $region38: #{tpu_custom_call.1} parent=11 // pred_check_branch
          %385 = sbr.rel (%p383) target = $region40
        $region39: #{tpu_custom_call.1} parent=11 // pred_region
          %s387 = ssub.s32 256, 256
          %388 = vsyncadd [#allocation8], %s387
          %s389 = sshll.u32 [#allocation9], 4
          %s390 = int_to_ptr.vmem [resolvable:$true] %s389
          %395 = dma.hbm_to_vmem [thread:$0]  %s8, 256, %s390, [#allocation8], 64, 64, 4
        $region40: #{tpu_custom_call.1} parent=11 // pred_fallthru
          _
        // Predicated region
        $region41: #{tpu_custom_call.1} parent=11 // pred_check
          %p396 = pneg %p224
        $region42: #{tpu_custom_call.1} parent=11 // pred_check_branch
          %398 = sbr.rel (%p396) target = $region44
        $region43: #{tpu_custom_call.1} parent=11 // pred_region
          %s400 = ssub.s32 16, 16
          %401 = vsyncadd [#allocation11], %s400
          %s403 = sshll.u32 [#allocation10], 4
          %s404 = int_to_ptr.vmem [resolvable:$true] %s403
          %406 = dma.hbm_to_vmem [thread:$0]  %s9, 16, %s404, [#allocation11]
        $region44: #{tpu_custom_call.1} parent=11 // pred_fallthru
          _
        // Predicated region
        $region45: #{tpu_custom_call.1} parent=11 // pred_check
          %p407 = pneg %p245
        $region46: #{tpu_custom_call.1} parent=11 // pred_check_branch
          %409 = sbr.rel (%p407) target = $region48
        $region47: #{tpu_custom_call.1} parent=11 // pred_region
          _
        $region48: #{tpu_custom_call.1} parent=11 // pred_fallthru
          _
        // Predicated region
        $region49: #{tpu_custom_call.1} parent=11 // pred_check
          %p410 = pneg %p266
        $region50: #{tpu_custom_call.1} parent=11 // pred_check_branch
          %412 = sbr.rel (%p410) target = $region52
        $region51: #{tpu_custom_call.1} parent=11 // pred_region
          _
        $region52: #{tpu_custom_call.1} parent=11 // pred_fallthru
          _
        // Predicated region
        $region53: #{tpu_custom_call.1} parent=11 // pred_check
          %p413 = pneg %p287
        $region54: #{tpu_custom_call.1} parent=11 // pred_check_branch
          %415 = sbr.rel (%p413) target = $region56
        $region55: #{tpu_custom_call.1} parent=11 // pred_region
          _
        $region56: #{tpu_custom_call.1} parent=11 // pred_fallthru
          _
        // Predicated region
        $region57: #{tpu_custom_call.1} parent=11 // pred_check
          %p416 = pneg %p308
        $region58: #{tpu_custom_call.1} parent=11 // pred_check_branch
          %418 = sbr.rel (%p416) target = $region60
        $region59: #{tpu_custom_call.1} parent=11 // pred_region
          _
        $region60: #{tpu_custom_call.1} parent=11 // pred_fallthru
          _
      $region12: #{tpu_custom_call.1} parent=5 // pred_fallthru
        _
      %p419 = scmp.lt.s32.totalorder %s30, 2
      // Predicated region
      $region61: #{tpu_custom_call.1} parent=5 // pred_check
        %p420 = pneg %p419
      $region62: #{tpu_custom_call.1} parent=5 // pred_check_branch
        %422 = sbr.rel (%p420) target = $region64
      $region63: #{tpu_custom_call.1} parent=5 // pred_region
        // Predicated region
        $region65: #{tpu_custom_call.1} parent=63 // pred_check
          %p423 = pneg %p50
        $region66: #{tpu_custom_call.1} parent=63 // pred_check_branch
          %425 = sbr.rel (%p423) target = $region68
        $region67: #{tpu_custom_call.1} parent=63 // pred_region
          %p426 = scmp.lt.s32.totalorder %s30, 1
          %s427 = scalar_select %p426, %s30, 1
          %s428 = smul.addr %s427, 8
          %s429 = scalar_lea.vmem %s1, %s428
        $region68: #{tpu_custom_call.1} parent=63 // pred_fallthru
          _
      $region64: #{tpu_custom_call.1} parent=5 // pred_fallthru
        _
      %p430 = scmp.le.s32.totalorder 1, %s30
      %p431 = scmp.lt.s32.totalorder %s30, 3
      %p432 = pnand %p430, %p431
      %p433 = pneg %p432
      // Predicated region
      $region69: #{tpu_custom_call.1} parent=5 // pred_check
        _
      $region70: #{tpu_custom_call.1} parent=5 // pred_check_branch
        %435 = sbr.rel (%p432) target = $region72
      $region71: #{tpu_custom_call.1} parent=5 // pred_region
        %s436 = ssub.s32 %s30, 1
        // Predicated region
        $region73: #{tpu_custom_call.1} parent=71 // pred_check
          %p437 = pneg %p161
        $region74: #{tpu_custom_call.1} parent=71 // pred_check_branch
          %439 = sbr.rel (%p437) target = $region76
        $region75: #{tpu_custom_call.1} parent=71 // pred_region
          %440 = dma.done [#allocation5], 16
        $region76: #{tpu_custom_call.1} parent=71 // pred_fallthru
          _
        // Predicated region
        $region77: #{tpu_custom_call.1} parent=71 // pred_check
          %p441 = pneg %p182
        $region78: #{tpu_custom_call.1} parent=71 // pred_check_branch
          %443 = sbr.rel (%p441) target = $region80
        $region79: #{tpu_custom_call.1} parent=71 // pred_region
          %444 = dma.done [#allocation8], 16
        $region80: #{tpu_custom_call.1} parent=71 // pred_fallthru
          _
        // Predicated region
        $region81: #{tpu_custom_call.1} parent=71 // pred_check
          %p445 = pneg %p203
        $region82: #{tpu_custom_call.1} parent=71 // pred_check_branch
          %447 = sbr.rel (%p445) target = $region84
        $region83: #{tpu_custom_call.1} parent=71 // pred_region
          %448 = dma.done [#allocation8], 256
        $region84: #{tpu_custom_call.1} parent=71 // pred_fallthru
          _
        // Predicated region
        $region85: #{tpu_custom_call.1} parent=71 // pred_check
          %p449 = pneg %p224
        $region86: #{tpu_custom_call.1} parent=71 // pred_check_branch
          %451 = sbr.rel (%p449) target = $region88
        $region87: #{tpu_custom_call.1} parent=71 // pred_region
          %452 = dma.done [#allocation11], 16
        $region88: #{tpu_custom_call.1} parent=71 // pred_fallthru
          _
        %p453 = scmp.lt.s32.totalorder %s35, 1
        %s454 = scalar_select %p453, %s35, 1
        %s455 = smul.addr %s454, 8
        %s456 = scalar_lea.vmem %s1, %s455
        %p457 = pneg %p56
        %p458 = pneg %p53
        %p459 = pneg %p77
        %p460 = pneg %p74
        %p461 = pneg %p98
        %p462 = pneg %p95
        %p463 = pneg %p119
        %p464 = pneg %p116
        %p465 = pneg %p140
        %p466 = pneg %p137
        %p467 = pneg %p161
        %p468 = pneg %p158
        %p469 = pneg %p182
        %p470 = pneg %p179
        %p471 = pneg %p203
        %p472 = pneg %p200
        %p473 = pneg %p224
        %p474 = pneg %p221
        %p475 = pneg %p245
        %p476 = pneg %p242
        %p477 = pneg %p266
        %p478 = pneg %p263
        %p479 = pneg %p287
        %p480 = pneg %p284
        %p481 = pneg %p308
        %p482 = pneg %p305
        %p483 = pneg %p334
        %p484 = pneg %p331
        %s485 = sand.u32 %s321, 1
        %s486 = scalar_lea.sflag [#allocation6], %s485
        %s487 = sand.u32 %s321, 1
        %s488 = smul.addr %s487, 8
        %s489 = scalar_lea.vmem [#allocation12], %s488
        %p490 = scmp.lt.s32.totalorder %s35, 1
        %s491 = scalar_select %p490, %s35, 1
        %s492 = smul.addr %s491, 8
        %s493 = scalar_lea.vmem %s1, %s492
        %v495 = vld [vmem:[%s493] sm:$0xff]
        %s496 = sld [smem:[#allocation3 + %s35]]
        %v497 = vlaneseq
        %v498 = vand.u32 %v497, 127
        %v499 = vstv %s496
        %vm500 = vcmp.lt.s32.totalorder %v498, %v499
        %v501 = vsel %vm500, 0.0, -1000000.0
        %v502 = vpack.c.bf16 %v495, %v495
        %v503 = vld [vmem:[%s2] sm:$0xf]
        %v504 = vld [vmem:[%s2 + $0x4] sm:$0xf]
        %v505 = vld [vmem:[%s2 + $0x8] sm:$0xf]
        %v506 = vld [vmem:[%s2 + $0xc] sm:$0xf]
        %v507 = vld [vmem:[%s3] sm:$0x1]
        %v509 = vlaneseq
        %v510 = vshrl.u32 %v509, 7
        %v511 = vsub.s32 0, %v510
        %v512 = vrot.slane %v507, %v511
        %v518 = vunpack.c.l.b16 %v503
        %v519 = vunpack.c.l.b16 %v504
        %v520 = vunpack.c.l.b16 %v505
        %v521 = vunpack.c.l.b16 %v506
        %v522 = vpack.c.b16 %v519, %v518
        %v523 = vpack.c.b16 %v521, %v520
        %vm526 = vcmask 261120
        %v528 = vsel %vm526, %v502, 0
        %530 = vmatprep.subr.bf16.mxu0 0
        %531 = vmatpush1.bf16.msra.mxu0 0
        %532 = vmatprep.subr.bf16.mxu0 0
        %533 = vmatpush1.bf16.msra.mxu0 0
        %534 = vmatprep.subr.bf16.mxu0 0
        %535 = vmatpush1.bf16.msra.mxu0 0
        %536 = vmatprep.subr.bf16.mxu0 0
        %537 = vmatpush1.bf16.msra.mxu0 0
        %538 = vmatprep.subr.bf16.mxu0 0
        %539 = vmatpush1.bf16.msra.mxu0 0
        %540 = vmatprep.subr.bf16.mxu0 0
        %541 = vmatpush1.bf16.msra.mxu0 0
        %542 = vmatprep.subr.bf16.mxu0 0
        %543 = vmatpush1.bf16.msra.mxu0 %v523
        %544 = vmatprep.subr.bf16.mxu0 0
        %545 = vmatpush1.bf16.msra.mxu0 %v522
        %546 = vmatprep.subr.bf16.mxu0 0
        %547 = vmatpush2.bf16.msra.mxu0 0
        %548 = vmatprep.subr.bf16.mxu0 0
        %549 = vmatpush2.bf16.msra.mxu0 0
        %550 = vmatprep.subr.bf16.mxu0 0
        %551 = vmatpush2.bf16.msra.mxu0 0
        %552 = vmatprep.subr.bf16.mxu0 0
        %553 = vmatpush2.bf16.msra.mxu0 0
        %554 = vmatprep.subr.bf16.mxu0 0
        %555 = vmatpush2.bf16.msra.mxu0 0
        %556 = vmatprep.subr.bf16.mxu0 0
        %557 = vmatpush2.bf16.msra.mxu0 0
        %558 = vmatprep.subr.bf16.mxu0 0
        %559 = vmatpush2.bf16.msra.mxu0 0
        %560 = vmatprep.subr.bf16.mxu0 0
        %561 = vmatpush2.bf16.msra.mxu0 0
        %562 = vmatprep.mubr.bf16.mxu0 0
        %563 = vmatmul.mubr.bf16.gmra.mxu0 %v528
        %v564 = vpop.f32.mrf.mxu0
        %v565 = vadd.f32 %v512, %v564
        %v566 = vpop.f32.mrf.mxu0
        %v567 = vpop.f32.mrf.mxu0
        %v568 = vpop.f32.mrf.mxu0
        %569 = vdwg.mxu0
        %571 = vrot.lane.b32.xlu0 %v565, 120
        %v572 = vpop.permute.xlu0 %571
        %574 = vrot.lane.b32.xlu0 %v565, 112
        %v575 = vpop.permute.xlu0 %574
        %577 = vrot.lane.b32.xlu0 %v565, 104
        %v578 = vpop.permute.xlu0 %577
        %v580 = vcombine.low %v565, %v575
        %v581 = vcombine.high %v565, %v575
        %v583 = vunpack.c.l.s4 1983009808
        %v584 = vunpack.c.0.s8 %v583
        %v585 = vlaneseq
        %v586 = vshrl.u32 %v585, 7
        %v587 = vsub.s32 %v584, %v586
        %v588 = vrot.slane %v580, %v587
        %v590 = vunpack.c.l.s4 1983009808
        %v591 = vunpack.c.0.s8 %v590
        %v592 = vlaneseq
        %v593 = vshrl.u32 %v592, 7
        %v594 = vsub.s32 %v591, %v593
        %v595 = vrot.slane %v581, %v594
        %v596 = vcombine.low %v572, %v578
        %v597 = vcombine.high %v572, %v578
        %v599 = vunpack.c.l.s4 1983009808
        %v600 = vunpack.c.0.s8 %v599
        %v601 = vlaneseq
        %v602 = vshrl.u32 %v601, 7
        %v603 = vsub.s32 %v600, %v602
        %v604 = vrot.slane %v596, %v603
        %v606 = vunpack.c.l.s4 1983009808
        %v607 = vunpack.c.0.s8 %v606
        %v608 = vlaneseq
        %v609 = vshrl.u32 %v608, 7
        %v610 = vsub.s32 %v607, %v609
        %v611 = vrot.slane %v597, %v610
        %v612 = vcombine.low %v588, %v604
        %v613 = vcombine.high %v588, %v604
        %v615 = vunpack.c.l.s4 1934713408
        %v616 = vunpack.c.0.s8 %v615
        %v617 = vlaneseq
        %v618 = vshrl.u32 %v617, 7
        %v619 = vsub.s32 %v616, %v618
        %v620 = vrot.slane %v612, %v619
        %v622 = vunpack.c.l.s4 1934713408
        %v623 = vunpack.c.0.s8 %v622
        %v624 = vlaneseq
        %v625 = vshrl.u32 %v624, 7
        %v626 = vsub.s32 %v623, %v625
        %v627 = vrot.slane %v613, %v626
        %v628 = vcombine.low %v595, %v611
        %v629 = vcombine.high %v595, %v611
        %v631 = vunpack.c.l.s4 1934713408
        %v632 = vunpack.c.0.s8 %v631
        %v633 = vlaneseq
        %v634 = vshrl.u32 %v633, 7
        %v635 = vsub.s32 %v632, %v634
        %v636 = vrot.slane %v628, %v635
        %v638 = vunpack.c.l.s4 1934713408
        %v639 = vunpack.c.0.s8 %v638
        %v640 = vlaneseq
        %v641 = vshrl.u32 %v640, 7
        %v642 = vsub.s32 %v639, %v641
        %v643 = vrot.slane %v629, %v642
        %v644 = vcombine.high %v620, 0.0
        %v645 = vcombine.high %v627, 0.0
        %v646 = vcombine.high %v636, 0.0
        %v647 = vcombine.high %v643, 0.0
        %v648 = vcombine.low %v620, %v627
        %v650 = vunpack.c.l.s4 1983009808
        %v651 = vunpack.c.0.s8 %v650
        %v652 = vlaneseq
        %v653 = vshrl.u32 %v652, 7
        %v654 = vsub.s32 %v651, %v653
        %v655 = vrot.slane %v648, %v654
        %v656 = vcombine.low %v644, %v645
        %v658 = vunpack.c.l.s4 1983009808
        %v659 = vunpack.c.0.s8 %v658
        %v660 = vlaneseq
        %v661 = vshrl.u32 %v660, 7
        %v662 = vsub.s32 %v659, %v661
        %v663 = vrot.slane %v656, %v662
        %v664 = vcombine.low %v636, %v643
        %v666 = vunpack.c.l.s4 1983009808
        %v667 = vunpack.c.0.s8 %v666
        %v668 = vlaneseq
        %v669 = vshrl.u32 %v668, 7
        %v670 = vsub.s32 %v667, %v669
        %v671 = vrot.slane %v664, %v670
        %v672 = vcombine.low %v646, %v647
        %v674 = vunpack.c.l.s4 1983009808
        %v675 = vunpack.c.0.s8 %v674
        %v676 = vlaneseq
        %v677 = vshrl.u32 %v676, 7
        %v678 = vsub.s32 %v675, %v677
        %v679 = vrot.slane %v672, %v678
        %v680 = vcombine.low %v655, %v663
        %v681 = vcombine.high %v655, %v663
        %v683 = vunpack.c.l.s4 1934713408
        %v684 = vunpack.c.0.s8 %v683
        %v685 = vlaneseq
        %v686 = vshrl.u32 %v685, 7
        %v687 = vsub.s32 %v684, %v686
        %v688 = vrot.slane %v680, %v687
        %v690 = vunpack.c.l.s4 1934713408
        %v691 = vunpack.c.0.s8 %v690
        %v692 = vlaneseq
        %v693 = vshrl.u32 %v692, 7
        %v694 = vsub.s32 %v691, %v693
        %v695 = vrot.slane %v681, %v694
        %v696 = vcombine.low %v671, %v679
        %v697 = vcombine.high %v671, %v679
        %v699 = vunpack.c.l.s4 1934713408
        %v700 = vunpack.c.0.s8 %v699
        %v701 = vlaneseq
        %v702 = vshrl.u32 %v701, 7
        %v703 = vsub.s32 %v700, %v702
        %v704 = vrot.slane %v696, %v703
        %v706 = vunpack.c.l.s4 1934713408
        %v707 = vunpack.c.0.s8 %v706
        %v708 = vlaneseq
        %v709 = vshrl.u32 %v708, 7
        %v710 = vsub.s32 %v707, %v709
        %v711 = vrot.slane %v697, %v710
        %v712 = vcombine.low %v688, %v704
        %v713 = vcombine.high %v688, %v704
        %v714 = vcombine.low %v695, %v711
        %v715 = vcombine.high %v695, %v711
        %v716 = vpack.c.bf16 %v712, %v712
        %v717 = vpack.c.bf16 %v713, %v713
        %v718 = vpack.c.bf16 %v714, %v714
        %v719 = vpack.c.bf16 %v715, %v715
        %720 = vrot.lane.b32.xlu0 %v565, 96
        %v721 = vpop.permute.xlu0 %720
        %722 = vrot.lane.b32.xlu0 %v572, 96
        %v723 = vpop.permute.xlu0 %722
        %724 = vrot.lane.b32.xlu0 %v575, 96
        %v725 = vpop.permute.xlu0 %724
        %726 = vrot.lane.b32.xlu0 %v578, 96
        %v727 = vpop.permute.xlu0 %726
        %v732 = vcombine.low %v721, %v725
        %v733 = vcombine.high %v721, %v725
        %v735 = vunpack.c.l.s4 1983009808
        %v736 = vunpack.c.0.s8 %v735
        %v737 = vlaneseq
        %v738 = vshrl.u32 %v737, 7
        %v739 = vsub.s32 %v736, %v738
        %v740 = vrot.slane %v732, %v739
        %v742 = vunpack.c.l.s4 1983009808
        %v743 = vunpack.c.0.s8 %v742
        %v744 = vlaneseq
        %v745 = vshrl.u32 %v744, 7
        %v746 = vsub.s32 %v743, %v745
        %v747 = vrot.slane %v733, %v746
        %v748 = vcombine.low %v723, %v727
        %v749 = vcombine.high %v723, %v727
        %v751 = vunpack.c.l.s4 1983009808
        %v752 = vunpack.c.0.s8 %v751
        %v753 = vlaneseq
        %v754 = vshrl.u32 %v753, 7
        %v755 = vsub.s32 %v752, %v754
        %v756 = vrot.slane %v748, %v755
        %v758 = vunpack.c.l.s4 1983009808
        %v759 = vunpack.c.0.s8 %v758
        %v760 = vlaneseq
        %v761 = vshrl.u32 %v760, 7
        %v762 = vsub.s32 %v759, %v761
        %v763 = vrot.slane %v749, %v762
        %v764 = vcombine.low %v740, %v756
        %v765 = vcombine.high %v740, %v756
        %v767 = vunpack.c.l.s4 1934713408
        %v768 = vunpack.c.0.s8 %v767
        %v769 = vlaneseq
        %v770 = vshrl.u32 %v769, 7
        %v771 = vsub.s32 %v768, %v770
        %v772 = vrot.slane %v764, %v771
        %v774 = vunpack.c.l.s4 1934713408
        %v775 = vunpack.c.0.s8 %v774
        %v776 = vlaneseq
        %v777 = vshrl.u32 %v776, 7
        %v778 = vsub.s32 %v775, %v777
        %v779 = vrot.slane %v765, %v778
        %v780 = vcombine.low %v747, %v763
        %v781 = vcombine.high %v747, %v763
        %v783 = vunpack.c.l.s4 1934713408
        %v784 = vunpack.c.0.s8 %v783
        %v785 = vlaneseq
        %v786 = vshrl.u32 %v785, 7
        %v787 = vsub.s32 %v784, %v786
        %v788 = vrot.slane %v780, %v787
        %v790 = vunpack.c.l.s4 1934713408
        %v791 = vunpack.c.0.s8 %v790
        %v792 = vlaneseq
        %v793 = vshrl.u32 %v792, 7
        %v794 = vsub.s32 %v791, %v793
        %v795 = vrot.slane %v781, %v794
        %v796 = vcombine.high %v772, 0.0
        %v797 = vcombine.high %v779, 0.0
        %v798 = vcombine.high %v788, 0.0
        %v799 = vcombine.high %v795, 0.0
        %v800 = vcombine.low %v772, %v779
        %v802 = vunpack.c.l.s4 1983009808
        %v803 = vunpack.c.0.s8 %v802
        %v804 = vlaneseq
        %v805 = vshrl.u32 %v804, 7
        %v806 = vsub.s32 %v803, %v805
        %v807 = vrot.slane %v800, %v806
        %v808 = vcombine.low %v796, %v797
        %v810 = vunpack.c.l.s4 1983009808
        %v811 = vunpack.c.0.s8 %v810
        %v812 = vlaneseq
        %v813 = vshrl.u32 %v812, 7
        %v814 = vsub.s32 %v811, %v813
        %v815 = vrot.slane %v808, %v814
        %v816 = vcombine.low %v788, %v795
        %v818 = vunpack.c.l.s4 1983009808
        %v819 = vunpack.c.0.s8 %v818
        %v820 = vlaneseq
        %v821 = vshrl.u32 %v820, 7
        %v822 = vsub.s32 %v819, %v821
        %v823 = vrot.slane %v816, %v822
        %v824 = vcombine.low %v798, %v799
        %v826 = vunpack.c.l.s4 1983009808
        %v827 = vunpack.c.0.s8 %v826
        %v828 = vlaneseq
        %v829 = vshrl.u32 %v828, 7
        %v830 = vsub.s32 %v827, %v829
        %v831 = vrot.slane %v824, %v830
        %v832 = vcombine.low %v807, %v815
        %v833 = vcombine.high %v807, %v815
        %v835 = vunpack.c.l.s4 1934713408
        %v836 = vunpack.c.0.s8 %v835
        %v837 = vlaneseq
        %v838 = vshrl.u32 %v837, 7
        %v839 = vsub.s32 %v836, %v838
        %v840 = vrot.slane %v832, %v839
        %v842 = vunpack.c.l.s4 1934713408
        %v843 = vunpack.c.0.s8 %v842
        %v844 = vlaneseq
        %v845 = vshrl.u32 %v844, 7
        %v846 = vsub.s32 %v843, %v845
        %v847 = vrot.slane %v833, %v846
        %v848 = vcombine.low %v823, %v831
        %v849 = vcombine.high %v823, %v831
        %v851 = vunpack.c.l.s4 1934713408
        %v852 = vunpack.c.0.s8 %v851
        %v853 = vlaneseq
        %v854 = vshrl.u32 %v853, 7
        %v855 = vsub.s32 %v852, %v854
        %v856 = vrot.slane %v848, %v855
        %v858 = vunpack.c.l.s4 1934713408
        %v859 = vunpack.c.0.s8 %v858
        %v860 = vlaneseq
        %v861 = vshrl.u32 %v860, 7
        %v862 = vsub.s32 %v859, %v861
        %v863 = vrot.slane %v849, %v862
        %v864 = vcombine.low %v840, %v856
        %v865 = vcombine.high %v840, %v856
        %v866 = vcombine.low %v847, %v863
        %v867 = vcombine.high %v847, %v863
        %v868 = vpack.c.bf16 %v864, %v864
        %v869 = vpack.c.bf16 %v865, %v865
        %v870 = vpack.c.bf16 %v866, %v866
        %v871 = vpack.c.bf16 %v867, %v867
        %872 = vrot.lane.b32.xlu0 %v565, 64
        %v873 = vpop.permute.xlu0 %872
        %874 = vrot.lane.b32.xlu0 %v572, 64
        %v875 = vpop.permute.xlu0 %874
        %876 = vrot.lane.b32.xlu0 %v575, 64
        %v877 = vpop.permute.xlu0 %876
        %878 = vrot.lane.b32.xlu0 %v578, 64
        %v879 = vpop.permute.xlu0 %878
        %v884 = vcombine.low %v873, %v877
        %v885 = vcombine.high %v873, %v877
        %v887 = vunpack.c.l.s4 1983009808
        %v888 = vunpack.c.0.s8 %v887
        %v889 = vlaneseq
        %v890 = vshrl.u32 %v889, 7
        %v891 = vsub.s32 %v888, %v890
        %v892 = vrot.slane %v884, %v891
        %v894 = vunpack.c.l.s4 1983009808
        %v895 = vunpack.c.0.s8 %v894
        %v896 = vlaneseq
        %v897 = vshrl.u32 %v896, 7
        %v898 = vsub.s32 %v895, %v897
        %v899 = vrot.slane %v885, %v898
        %v900 = vcombine.low %v875, %v879
        %v901 = vcombine.high %v875, %v879
        %v903 = vunpack.c.l.s4 1983009808
        %v904 = vunpack.c.0.s8 %v903
        %v905 = vlaneseq
        %v906 = vshrl.u32 %v905, 7
        %v907 = vsub.s32 %v904, %v906
        %v908 = vrot.slane %v900, %v907
        %v910 = vunpack.c.l.s4 1983009808
        %v911 = vunpack.c.0.s8 %v910
        %v912 = vlaneseq
        %v913 = vshrl.u32 %v912, 7
        %v914 = vsub.s32 %v911, %v913
        %v915 = vrot.slane %v901, %v914
        %v916 = vcombine.low %v892, %v908
        %v917 = vcombine.high %v892, %v908
        %v919 = vunpack.c.l.s4 1934713408
        %v920 = vunpack.c.0.s8 %v919
        %v921 = vlaneseq
        %v922 = vshrl.u32 %v921, 7
        %v923 = vsub.s32 %v920, %v922
        %v924 = vrot.slane %v916, %v923
        %v926 = vunpack.c.l.s4 1934713408
        %v927 = vunpack.c.0.s8 %v926
        %v928 = vlaneseq
        %v929 = vshrl.u32 %v928, 7
        %v930 = vsub.s32 %v927, %v929
        %v931 = vrot.slane %v917, %v930
        %v932 = vcombine.low %v899, %v915
        %v933 = vcombine.high %v899, %v915
        %v935 = vunpack.c.l.s4 1934713408
        %v936 = vunpack.c.0.s8 %v935
        %v937 = vlaneseq
        %v938 = vshrl.u32 %v937, 7
        %v939 = vsub.s32 %v936, %v938
        %v940 = vrot.slane %v932, %v939
        %v942 = vunpack.c.l.s4 1934713408
        %v943 = vunpack.c.0.s8 %v942
        %v944 = vlaneseq
        %v945 = vshrl.u32 %v944, 7
        %v946 = vsub.s32 %v943, %v945
        %v947 = vrot.slane %v933, %v946
        %v948 = vcombine.high %v924, 0.0
        %v949 = vcombine.high %v931, 0.0
        %v950 = vcombine.high %v940, 0.0
        %v951 = vcombine.high %v947, 0.0
        %v952 = vcombine.low %v924, %v931
        %v954 = vunpack.c.l.s4 1983009808
        %v955 = vunpack.c.0.s8 %v954
        %v956 = vlaneseq
        %v957 = vshrl.u32 %v956, 7
        %v958 = vsub.s32 %v955, %v957
        %v959 = vrot.slane %v952, %v958
        %v960 = vcombine.low %v948, %v949
        %v962 = vunpack.c.l.s4 1983009808
        %v963 = vunpack.c.0.s8 %v962
        %v964 = vlaneseq
        %v965 = vshrl.u32 %v964, 7
        %v966 = vsub.s32 %v963, %v965
        %v967 = vrot.slane %v960, %v966
        %v968 = vcombine.low %v940, %v947
        %v970 = vunpack.c.l.s4 1983009808
        %v971 = vunpack.c.0.s8 %v970
        %v972 = vlaneseq
        %v973 = vshrl.u32 %v972, 7
        %v974 = vsub.s32 %v971, %v973
        %v975 = vrot.slane %v968, %v974
        %v976 = vcombine.low %v950, %v951
        %v978 = vunpack.c.l.s4 1983009808
        %v979 = vunpack.c.0.s8 %v978
        %v980 = vlaneseq
        %v981 = vshrl.u32 %v980, 7
        %v982 = vsub.s32 %v979, %v981
        %v983 = vrot.slane %v976, %v982
        %v984 = vcombine.low %v959, %v967
        %v985 = vcombine.high %v959, %v967
        %v987 = vunpack.c.l.s4 1934713408
        %v988 = vunpack.c.0.s8 %v987
        %v989 = vlaneseq
        %v990 = vshrl.u32 %v989, 7
        %v991 = vsub.s32 %v988, %v990
        %v992 = vrot.slane %v984, %v991
        %v994 = vunpack.c.l.s4 1934713408
        %v995 = vunpack.c.0.s8 %v994
        %v996 = vlaneseq
        %v997 = vshrl.u32 %v996, 7
        %v998 = vsub.s32 %v995, %v997
        %v999 = vrot.slane %v985, %v998
        %v1000 = vcombine.low %v975, %v983
        %v1001 = vcombine.high %v975, %v983
        %v1003 = vunpack.c.l.s4 1934713408
        %v1004 = vunpack.c.0.s8 %v1003
        %v1005 = vlaneseq
        %v1006 = vshrl.u32 %v1005, 7
        %v1007 = vsub.s32 %v1004, %v1006
        %v1008 = vrot.slane %v1000, %v1007
        %v1010 = vunpack.c.l.s4 1934713408
        %v1011 = vunpack.c.0.s8 %v1010
        %v1012 = vlaneseq
        %v1013 = vshrl.u32 %v1012, 7
        %v1014 = vsub.s32 %v1011, %v1013
        %v1015 = vrot.slane %v1001, %v1014
        %v1016 = vcombine.low %v992, %v1008
        %v1017 = vcombine.high %v992, %v1008
        %v1018 = vcombine.low %v999, %v1015
        %v1019 = vcombine.high %v999, %v1015
        %v1020 = vpack.c.bf16 %v1016, %v1016
        %v1021 = vpack.c.bf16 %v1017, %v1017
        %v1022 = vpack.c.bf16 %v1018, %v1018
        %v1023 = vpack.c.bf16 %v1019, %v1019
        %vm1024 = vcmask 64512
        %v1026 = vsel %vm1024, %v716, 0
        %v1029 = vsel %vm1024, %v868, 0
        %1031 = vmatprep.subr.bf16.mxu0 0
        %1032 = vmatpush1.bf16.xpose.msra.mxu0 0
        %1033 = vmatprep.subr.bf16.mxu0 0
        %1034 = vmatpush1.bf16.xpose.msra.mxu0 0
        %1035 = vmatprep.subr.bf16.mxu0 0
        %1036 = vmatpush1.bf16.xpose.msra.mxu0 0
        %1037 = vmatprep.subr.bf16.mxu0 0
        %1038 = vmatpush1.bf16.xpose.msra.mxu0 0
        %1039 = vmatprep.subr.bf16.mxu0 0
        %1040 = vmatpush1.bf16.xpose.msra.mxu0 0
        %1041 = vmatprep.subr.bf16.mxu0 0
        %1042 = vmatpush1.bf16.xpose.msra.mxu0 0
        %1043 = vmatprep.subr.bf16.mxu0 0
        %1044 = vmatpush1.bf16.xpose.msra.mxu0 0
        %1045 = vmatprep.subr.bf16.mxu0 0
        %1046 = vmatpush1.bf16.xpose.msra.mxu0 %v1029
        %1047 = vmatprep.subr.bf16.mxu0 0
        %1048 = vmatpush2.bf16.xpose.msra.mxu0 0
        %1049 = vmatprep.subr.bf16.mxu0 0
        %1050 = vmatpush2.bf16.xpose.msra.mxu0 0
        %1051 = vmatprep.subr.bf16.mxu0 0
        %1052 = vmatpush2.bf16.xpose.msra.mxu0 0
        %1053 = vmatprep.subr.bf16.mxu0 0
        %1054 = vmatpush2.bf16.xpose.msra.mxu0 0
        %1055 = vmatprep.subr.bf16.mxu0 0
        %1056 = vmatpush2.bf16.xpose.msra.mxu0 0
        %1057 = vmatprep.subr.bf16.mxu0 0
        %1058 = vmatpush2.bf16.xpose.msra.mxu0 0
        %1059 = vmatprep.subr.bf16.mxu0 0
        %1060 = vmatpush2.bf16.xpose.msra.mxu0 0
        %1061 = vmatprep.subr.bf16.mxu0 0
        %1062 = vmatpush2.bf16.xpose.msra.mxu0 0
        %1063 = vmatprep.mubr.bf16.mxu0 0
        %1064 = vmatmul.mubr.bf16.gmra.mxu0 %v1026
        %v1065 = vpop.f32.mrf.mxu0
        %v1066 = vadd.f32 0.0, %v1065
        %v1067 = vpop.f32.mrf.mxu0
        %v1068 = vpop.f32.mrf.mxu0
        %v1069 = vpop.f32.mrf.mxu0
        %1070 = vdwg.mxu0
        %v1072 = vsel %vm1024, %v717, 0
        %v1075 = vsel %vm1024, %v869, 0
        %1077 = vmatprep.subr.bf16.mxu0 0
        %1078 = vmatpush1.bf16.xpose.msra.mxu0 0
        %1079 = vmatprep.subr.bf16.mxu0 0
        %1080 = vmatpush1.bf16.xpose.msra.mxu0 0
        %1081 = vmatprep.subr.bf16.mxu0 0
        %1082 = vmatpush1.bf16.xpose.msra.mxu0 0
        %1083 = vmatprep.subr.bf16.mxu0 0
        %1084 = vmatpush1.bf16.xpose.msra.mxu0 0
        %1085 = vmatprep.subr.bf16.mxu0 0
        %1086 = vmatpush1.bf16.xpose.msra.mxu0 0
        %1087 = vmatprep.subr.bf16.mxu0 0
        %1088 = vmatpush1.bf16.xpose.msra.mxu0 0
        %1089 = vmatprep.subr.bf16.mxu0 0
        %1090 = vmatpush1.bf16.xpose.msra.mxu0 0
        %1091 = vmatprep.subr.bf16.mxu0 0
        %1092 = vmatpush1.bf16.xpose.msra.mxu0 %v1075
        %1093 = vmatprep.subr.bf16.mxu0 0
        %1094 = vmatpush2.bf16.xpose.msra.mxu0 0
        %1095 = vmatprep.subr.bf16.mxu0 0
        %1096 = vmatpush2.bf16.xpose.msra.mxu0 0
        %1097 = vmatprep.subr.bf16.mxu0 0
        %1098 = vmatpush2.bf16.xpose.msra.mxu0 0
        %1099 = vmatprep.subr.bf16.mxu0 0
        %1100 = vmatpush2.bf16.xpose.msra.mxu0 0
        %1101 = vmatprep.subr.bf16.mxu0 0
        %1102 = vmatpush2.bf16.xpose.msra.mxu0 0
        %1103 = vmatprep.subr.bf16.mxu0 0
        %1104 = vmatpush2.bf16.xpose.msra.mxu0 0
        %1105 = vmatprep.subr.bf16.mxu0 0
        %1106 = vmatpush2.bf16.xpose.msra.mxu0 0
        %1107 = vmatprep.subr.bf16.mxu0 0
        %1108 = vmatpush2.bf16.xpose.msra.mxu0 0
        %1109 = vmatprep.mubr.bf16.mxu0 0
        %1110 = vmatmul.mubr.bf16.gmra.mxu0 %v1072
        %v1111 = vpop.f32.mrf.mxu0
        %v1112 = vadd.f32 0.0, %v1111
        %v1113 = vpop.f32.mrf.mxu0
        %v1114 = vpop.f32.mrf.mxu0
        %v1115 = vpop.f32.mrf.mxu0
        %1116 = vdwg.mxu0
        %v1118 = vsel %vm1024, %v718, 0
        %v1121 = vsel %vm1024, %v870, 0
        %1123 = vmatprep.subr.bf16.mxu0 0
        %1124 = vmatpush1.bf16.xpose.msra.mxu0 0
        %1125 = vmatprep.subr.bf16.mxu0 0
        %1126 = vmatpush1.bf16.xpose.msra.mxu0 0
        %1127 = vmatprep.subr.bf16.mxu0 0
        %1128 = vmatpush1.bf16.xpose.msra.mxu0 0
        %1129 = vmatprep.subr.bf16.mxu0 0
        %1130 = vmatpush1.bf16.xpose.msra.mxu0 0
        %1131 = vmatprep.subr.bf16.mxu0 0
        %1132 = vmatpush1.bf16.xpose.msra.mxu0 0
        %1133 = vmatprep.subr.bf16.mxu0 0
        %1134 = vmatpush1.bf16.xpose.msra.mxu0 0
        %1135 = vmatprep.subr.bf16.mxu0 0
        %1136 = vmatpush1.bf16.xpose.msra.mxu0 0
        %1137 = vmatprep.subr.bf16.mxu0 0
        %1138 = vmatpush1.bf16.xpose.msra.mxu0 %v1121
        %1139 = vmatprep.subr.bf16.mxu0 0
        %1140 = vmatpush2.bf16.xpose.msra.mxu0 0
        %1141 = vmatprep.subr.bf16.mxu0 0
        %1142 = vmatpush2.bf16.xpose.msra.mxu0 0
        %1143 = vmatprep.subr.bf16.mxu0 0
        %1144 = vmatpush2.bf16.xpose.msra.mxu0 0
        %1145 = vmatprep.subr.bf16.mxu0 0
        %1146 = vmatpush2.bf16.xpose.msra.mxu0 0
        %1147 = vmatprep.subr.bf16.mxu0 0
        %1148 = vmatpush2.bf16.xpose.msra.mxu0 0
        %1149 = vmatprep.subr.bf16.mxu0 0
        %1150 = vmatpush2.bf16.xpose.msra.mxu0 0
        %1151 = vmatprep.subr.bf16.mxu0 0
        %1152 = vmatpush2.bf16.xpose.msra.mxu0 0
        %1153 = vmatprep.subr.bf16.mxu0 0
        %1154 = vmatpush2.bf16.xpose.msra.mxu0 0
        %1155 = vmatprep.mubr.bf16.mxu0 0
        %1156 = vmatmul.mubr.bf16.gmra.mxu0 %v1118
        %v1157 = vpop.f32.mrf.mxu0
        %v1158 = vadd.f32 0.0, %v1157
        %v1159 = vpop.f32.mrf.mxu0
        %v1160 = vpop.f32.mrf.mxu0
        %v1161 = vpop.f32.mrf.mxu0
        %1162 = vdwg.mxu0
        %v1164 = vsel %vm1024, %v719, 0
        %v1167 = vsel %vm1024, %v871, 0
        %1169 = vmatprep.subr.bf16.mxu0 0
        %1170 = vmatpush1.bf16.xpose.msra.mxu0 0
        %1171 = vmatprep.subr.bf16.mxu0 0
        %1172 = vmatpush1.bf16.xpose.msra.mxu0 0
        %1173 = vmatprep.subr.bf16.mxu0 0
        %1174 = vmatpush1.bf16.xpose.msra.mxu0 0
        %1175 = vmatprep.subr.bf16.mxu0 0
        %1176 = vmatpush1.bf16.xpose.msra.mxu0 0
        %1177 = vmatprep.subr.bf16.mxu0 0
        %1178 = vmatpush1.bf16.xpose.msra.mxu0 0
        %1179 = vmatprep.subr.bf16.mxu0 0
        %1180 = vmatpush1.bf16.xpose.msra.mxu0 0
        %1181 = vmatprep.subr.bf16.mxu0 0
        %1182 = vmatpush1.bf16.xpose.msra.mxu0 0
        %1183 = vmatprep.subr.bf16.mxu0 0
        %1184 = vmatpush1.bf16.xpose.msra.mxu0 %v1167
        %1185 = vmatprep.subr.bf16.mxu0 0
        %1186 = vmatpush2.bf16.xpose.msra.mxu0 0
        %1187 = vmatprep.subr.bf16.mxu0 0
        %1188 = vmatpush2.bf16.xpose.msra.mxu0 0
        %1189 = vmatprep.subr.bf16.mxu0 0
        %1190 = vmatpush2.bf16.xpose.msra.mxu0 0
        %1191 = vmatprep.subr.bf16.mxu0 0
        %1192 = vmatpush2.bf16.xpose.msra.mxu0 0
        %1193 = vmatprep.subr.bf16.mxu0 0
        %1194 = vmatpush2.bf16.xpose.msra.mxu0 0
        %1195 = vmatprep.subr.bf16.mxu0 0
        %1196 = vmatpush2.bf16.xpose.msra.mxu0 0
        %1197 = vmatprep.subr.bf16.mxu0 0
        %1198 = vmatpush2.bf16.xpose.msra.mxu0 0
        %1199 = vmatprep.subr.bf16.mxu0 0
        %1200 = vmatpush2.bf16.xpose.msra.mxu0 0
        %1201 = vmatprep.mubr.bf16.mxu0 0
        %1202 = vmatmul.mubr.bf16.gmra.mxu0 %v1164
        %v1203 = vpop.f32.mrf.mxu0
        %v1204 = vadd.f32 0.0, %v1203
        %v1205 = vpop.f32.mrf.mxu0
        %v1206 = vpop.f32.mrf.mxu0
        %v1207 = vpop.f32.mrf.mxu0
        %1208 = vdwg.mxu0
        %v1209 = vmul.f32 %v1066, 0.35355338
        %v1210 = vmul.f32 %v1112, 0.35355338
        %v1211 = vmul.f32 %v1158, 0.35355338
        %v1212 = vmul.f32 %v1204, 0.35355338
        %v1213 = vadd.f32 %v1209, %v501
        %v1214 = vadd.f32 %v1210, %v501
        %v1215 = vadd.f32 %v1211, %v501
        %v1216 = vadd.f32 %v1212, %v501
        %v1217 = vsel %vm1024, %v1213, -inf
        %1218 = vmax.xlane.f32.xlu0 %v1217
        %v1219 = vpop.xlane.xlu0 %1218
        %v1220 = vsel %vm1024, %v1214, -inf
        %1221 = vmax.xlane.f32.xlu0 %v1220
        %v1222 = vpop.xlane.xlu0 %1221
        %v1223 = vsel %vm1024, %v1215, -inf
        %1224 = vmax.xlane.f32.xlu0 %v1223
        %v1225 = vpop.xlane.xlu0 %1224
        %v1226 = vsel %vm1024, %v1216, -inf
        %1227 = vmax.xlane.f32.xlu0 %v1226
        %v1228 = vpop.xlane.xlu0 %1227
        %v1229 = vsub.f32 %v1213, %v1219
        %v1230 = vsub.f32 %v1214, %v1222
        %v1231 = vsub.f32 %v1215, %v1225
        %v1232 = vsub.f32 %v1216, %v1228
        %v1233 = vmul.f32 %v1229, 1.442695
        %v1234 = vpow.pop %v1233
        %v1235 = vmul.f32 %v1230, 1.442695
        %v1236 = vpow.pop %v1235
        %v1237 = vmul.f32 %v1231, 1.442695
        %v1238 = vpow.pop %v1237
        %v1239 = vmul.f32 %v1232, 1.442695
        %v1240 = vpow.pop %v1239
        %v1241 = vsel %vm1024, %v1234, 0.0
        %1242 = vadd.xlane.f32.xlu0 %v1241
        %v1243 = vpop.xlane.xlu0 %1242
        %v1244 = vsel %vm1024, %v1236, 0.0
        %1245 = vadd.xlane.f32.xlu0 %v1244
        %v1246 = vpop.xlane.xlu0 %1245
        %v1247 = vsel %vm1024, %v1238, 0.0
        %1248 = vadd.xlane.f32.xlu0 %v1247
        %v1249 = vpop.xlane.xlu0 %1248
        %v1250 = vsel %vm1024, %v1240, 0.0
        %1251 = vadd.xlane.f32.xlu0 %v1250
        %v1252 = vpop.xlane.xlu0 %1251
        %v1253 = vrcp.pop %v1243
        %v1254 = vrcp.pop %v1246
        %v1255 = vrcp.pop %v1249
        %v1256 = vrcp.pop %v1252
        %v1257 = vmul.f32 %v1234, %v1253
        %v1258 = vmul.f32 %v1236, %v1254
        %v1259 = vmul.f32 %v1238, %v1255
        %v1260 = vmul.f32 %v1240, %v1256
        %v1261 = vpack.c.bf16 %v1257, %v1257
        %v1262 = vpack.c.bf16 %v1258, %v1258
        %v1263 = vpack.c.bf16 %v1259, %v1259
        %v1264 = vpack.c.bf16 %v1260, %v1260
        %v1266 = vsel %vm1024, %v1261, 0
        %vm1268 = vcmask 1043456
        %v1270 = vsel %vm1268, %v1020, 0
        %1272 = vmatprep.subr.bf16.mxu0 0
        %1273 = vmatpush1.bf16.msra.mxu0 0
        %1274 = vmatprep.subr.bf16.mxu0 0
        %1275 = vmatpush1.bf16.msra.mxu0 0
        %1276 = vmatprep.subr.bf16.mxu0 0
        %1277 = vmatpush1.bf16.msra.mxu0 0
        %1278 = vmatprep.subr.bf16.mxu0 0
        %1279 = vmatpush1.bf16.msra.mxu0 0
        %1280 = vmatprep.subr.bf16.mxu0 0
        %1281 = vmatpush1.bf16.msra.mxu0 0
        %1282 = vmatprep.subr.bf16.mxu0 0
        %1283 = vmatpush1.bf16.msra.mxu0 0
        %1284 = vmatprep.subr.bf16.mxu0 0
        %1285 = vmatpush1.bf16.msra.mxu0 0
        %1286 = vmatprep.subr.bf16.mxu0 0
        %1287 = vmatpush1.bf16.msra.mxu0 %v1270
        %1288 = vmatprep.subr.bf16.mxu0 0
        %1289 = vmatpush2.bf16.msra.mxu0 0
        %1290 = vmatprep.subr.bf16.mxu0 0
        %1291 = vmatpush2.bf16.msra.mxu0 0
        %1292 = vmatprep.subr.bf16.mxu0 0
        %1293 = vmatpush2.bf16.msra.mxu0 0
        %1294 = vmatprep.subr.bf16.mxu0 0
        %1295 = vmatpush2.bf16.msra.mxu0 0
        %1296 = vmatprep.subr.bf16.mxu0 0
        %1297 = vmatpush2.bf16.msra.mxu0 0
        %1298 = vmatprep.subr.bf16.mxu0 0
        %1299 = vmatpush2.bf16.msra.mxu0 0
        %1300 = vmatprep.subr.bf16.mxu0 0
        %1301 = vmatpush2.bf16.msra.mxu0 0
        %1302 = vmatprep.subr.bf16.mxu0 0
        %1303 = vmatpush2.bf16.msra.mxu0 0
        %1304 = vmatprep.mubr.bf16.mxu0 0
        %1305 = vmatmul.mubr.bf16.gmra.mxu0 %v1266
        %v1306 = vpop.f32.mrf.mxu0
        %v1307 = vadd.f32 0.0, %v1306
        %v1308 = vpop.f32.mrf.mxu0
        %v1309 = vpop.f32.mrf.mxu0
        %v1310 = vpop.f32.mrf.mxu0
        %1311 = vdwg.mxu0
        %v1313 = vsel %vm1024, %v1262, 0
        %v1316 = vsel %vm1268, %v1021, 0
        %1318 = vmatprep.subr.bf16.mxu0 0
        %1319 = vmatpush1.bf16.msra.mxu0 0
        %1320 = vmatprep.subr.bf16.mxu0 0
        %1321 = vmatpush1.bf16.msra.mxu0 0
        %1322 = vmatprep.subr.bf16.mxu0 0
        %1323 = vmatpush1.bf16.msra.mxu0 0
        %1324 = vmatprep.subr.bf16.mxu0 0
        %1325 = vmatpush1.bf16.msra.mxu0 0
        %1326 = vmatprep.subr.bf16.mxu0 0
        %1327 = vmatpush1.bf16.msra.mxu0 0
        %1328 = vmatprep.subr.bf16.mxu0 0
        %1329 = vmatpush1.bf16.msra.mxu0 0
        %1330 = vmatprep.subr.bf16.mxu0 0
        %1331 = vmatpush1.bf16.msra.mxu0 0
        %1332 = vmatprep.subr.bf16.mxu0 0
        %1333 = vmatpush1.bf16.msra.mxu0 %v1316
        %1334 = vmatprep.subr.bf16.mxu0 0
        %1335 = vmatpush2.bf16.msra.mxu0 0
        %1336 = vmatprep.subr.bf16.mxu0 0
        %1337 = vmatpush2.bf16.msra.mxu0 0
        %1338 = vmatprep.subr.bf16.mxu0 0
        %1339 = vmatpush2.bf16.msra.mxu0 0
        %1340 = vmatprep.subr.bf16.mxu0 0
        %1341 = vmatpush2.bf16.msra.mxu0 0
        %1342 = vmatprep.subr.bf16.mxu0 0
        %1343 = vmatpush2.bf16.msra.mxu0 0
        %1344 = vmatprep.subr.bf16.mxu0 0
        %1345 = vmatpush2.bf16.msra.mxu0 0
        %1346 = vmatprep.subr.bf16.mxu0 0
        %1347 = vmatpush2.bf16.msra.mxu0 0
        %1348 = vmatprep.subr.bf16.mxu0 0
        %1349 = vmatpush2.bf16.msra.mxu0 0
        %1350 = vmatprep.mubr.bf16.mxu0 0
        %1351 = vmatmul.mubr.bf16.gmra.mxu0 %v1313
        %v1352 = vpop.f32.mrf.mxu0
        %v1353 = vadd.f32 0.0, %v1352
        %v1354 = vpop.f32.mrf.mxu0
        %v1355 = vpop.f32.mrf.mxu0
        %v1356 = vpop.f32.mrf.mxu0
        %1357 = vdwg.mxu0
        %v1359 = vsel %vm1024, %v1263, 0
        %v1362 = vsel %vm1268, %v1022, 0
        %1364 = vmatprep.subr.bf16.mxu0 0
        %1365 = vmatpush1.bf16.msra.mxu0 0
        %1366 = vmatprep.subr.bf16.mxu0 0
        %1367 = vmatpush1.bf16.msra.mxu0 0
        %1368 = vmatprep.subr.bf16.mxu0 0
        %1369 = vmatpush1.bf16.msra.mxu0 0
        %1370 = vmatprep.subr.bf16.mxu0 0
        %1371 = vmatpush1.bf16.msra.mxu0 0
        %1372 = vmatprep.subr.bf16.mxu0 0
        %1373 = vmatpush1.bf16.msra.mxu0 0
        %1374 = vmatprep.subr.bf16.mxu0 0
        %1375 = vmatpush1.bf16.msra.mxu0 0
        %1376 = vmatprep.subr.bf16.mxu0 0
        %1377 = vmatpush1.bf16.msra.mxu0 0
        %1378 = vmatprep.subr.bf16.mxu0 0
        %1379 = vmatpush1.bf16.msra.mxu0 %v1362
        %1380 = vmatprep.subr.bf16.mxu0 0
        %1381 = vmatpush2.bf16.msra.mxu0 0
        %1382 = vmatprep.subr.bf16.mxu0 0
        %1383 = vmatpush2.bf16.msra.mxu0 0
        %1384 = vmatprep.subr.bf16.mxu0 0
        %1385 = vmatpush2.bf16.msra.mxu0 0
        %1386 = vmatprep.subr.bf16.mxu0 0
        %1387 = vmatpush2.bf16.msra.mxu0 0
        %1388 = vmatprep.subr.bf16.mxu0 0
        %1389 = vmatpush2.bf16.msra.mxu0 0
        %1390 = vmatprep.subr.bf16.mxu0 0
        %1391 = vmatpush2.bf16.msra.mxu0 0
        %1392 = vmatprep.subr.bf16.mxu0 0
        %1393 = vmatpush2.bf16.msra.mxu0 0
        %1394 = vmatprep.subr.bf16.mxu0 0
        %1395 = vmatpush2.bf16.msra.mxu0 0
        %1396 = vmatprep.mubr.bf16.mxu0 0
        %1397 = vmatmul.mubr.bf16.gmra.mxu0 %v1359
        %v1398 = vpop.f32.mrf.mxu0
        %v1399 = vadd.f32 0.0, %v1398
        %v1400 = vpop.f32.mrf.mxu0
        %v1401 = vpop.f32.mrf.mxu0
        %v1402 = vpop.f32.mrf.mxu0
        %1403 = vdwg.mxu0
        %v1405 = vsel %vm1024, %v1264, 0
        %v1408 = vsel %vm1268, %v1023, 0
        %1410 = vmatprep.subr.bf16.mxu0 0
        %1411 = vmatpush1.bf16.msra.mxu0 0
        %1412 = vmatprep.subr.bf16.mxu0 0
        %1413 = vmatpush1.bf16.msra.mxu0 0
        %1414 = vmatprep.subr.bf16.mxu0 0
        %1415 = vmatpush1.bf16.msra.mxu0 0
        %1416 = vmatprep.subr.bf16.mxu0 0
        %1417 = vmatpush1.bf16.msra.mxu0 0
        %1418 = vmatprep.subr.bf16.mxu0 0
        %1419 = vmatpush1.bf16.msra.mxu0 0
        %1420 = vmatprep.subr.bf16.mxu0 0
        %1421 = vmatpush1.bf16.msra.mxu0 0
        %1422 = vmatprep.subr.bf16.mxu0 0
        %1423 = vmatpush1.bf16.msra.mxu0 0
        %1424 = vmatprep.subr.bf16.mxu0 0
        %1425 = vmatpush1.bf16.msra.mxu0 %v1408
        %1426 = vmatprep.subr.bf16.mxu0 0
        %1427 = vmatpush2.bf16.msra.mxu0 0
        %1428 = vmatprep.subr.bf16.mxu0 0
        %1429 = vmatpush2.bf16.msra.mxu0 0
        %1430 = vmatprep.subr.bf16.mxu0 0
        %1431 = vmatpush2.bf16.msra.mxu0 0
        %1432 = vmatprep.subr.bf16.mxu0 0
        %1433 = vmatpush2.bf16.msra.mxu0 0
        %1434 = vmatprep.subr.bf16.mxu0 0
        %1435 = vmatpush2.bf16.msra.mxu0 0
        %1436 = vmatprep.subr.bf16.mxu0 0
        %1437 = vmatpush2.bf16.msra.mxu0 0
        %1438 = vmatprep.subr.bf16.mxu0 0
        %1439 = vmatpush2.bf16.msra.mxu0 0
        %1440 = vmatprep.subr.bf16.mxu0 0
        %1441 = vmatpush2.bf16.msra.mxu0 0
        %1442 = vmatprep.mubr.bf16.mxu0 0
        %1443 = vmatmul.mubr.bf16.gmra.mxu0 %v1405
        %v1444 = vpop.f32.mrf.mxu0
        %v1445 = vadd.f32 0.0, %v1444
        %v1446 = vpop.f32.mrf.mxu0
        %v1447 = vpop.f32.mrf.mxu0
        %v1448 = vpop.f32.mrf.mxu0
        %1449 = vdwg.mxu0
        %v1450 = vcombine.low %v1307, %v1399
        %v1451 = vcombine.high %v1307, %v1399
        %v1453 = vunpack.c.l.s4 1983009808
        %v1454 = vunpack.c.0.s8 %v1453
        %v1455 = vlaneseq
        %v1456 = vshrl.u32 %v1455, 7
        %v1457 = vsub.s32 %v1454, %v1456
        %v1458 = vrot.slane %v1450, %v1457
        %v1460 = vunpack.c.l.s4 1983009808
        %v1461 = vunpack.c.0.s8 %v1460
        %v1462 = vlaneseq
        %v1463 = vshrl.u32 %v1462, 7
        %v1464 = vsub.s32 %v1461, %v1463
        %v1465 = vrot.slane %v1451, %v1464
        %v1466 = vcombine.low %v1353, %v1445
        %v1467 = vcombine.high %v1353, %v1445
        %v1469 = vunpack.c.l.s4 1983009808
        %v1470 = vunpack.c.0.s8 %v1469
        %v1471 = vlaneseq
        %v1472 = vshrl.u32 %v1471, 7
        %v1473 = vsub.s32 %v1470, %v1472
        %v1474 = vrot.slane %v1466, %v1473
        %v1476 = vunpack.c.l.s4 1983009808
        %v1477 = vunpack.c.0.s8 %v1476
        %v1478 = vlaneseq
        %v1479 = vshrl.u32 %v1478, 7
        %v1480 = vsub.s32 %v1477, %v1479
        %v1481 = vrot.slane %v1467, %v1480
        %v1482 = vcombine.low %v1458, %v1474
        %v1483 = vcombine.high %v1458, %v1474
        %v1485 = vunpack.c.l.s4 1934713408
        %v1486 = vunpack.c.0.s8 %v1485
        %v1487 = vlaneseq
        %v1488 = vshrl.u32 %v1487, 7
        %v1489 = vsub.s32 %v1486, %v1488
        %v1490 = vrot.slane %v1482, %v1489
        %v1492 = vunpack.c.l.s4 1934713408
        %v1493 = vunpack.c.0.s8 %v1492
        %v1494 = vlaneseq
        %v1495 = vshrl.u32 %v1494, 7
        %v1496 = vsub.s32 %v1493, %v1495
        %v1497 = vrot.slane %v1483, %v1496
        %v1498 = vcombine.low %v1465, %v1481
        %v1499 = vcombine.high %v1465, %v1481
        %v1501 = vunpack.c.l.s4 1934713408
        %v1502 = vunpack.c.0.s8 %v1501
        %v1503 = vlaneseq
        %v1504 = vshrl.u32 %v1503, 7
        %v1505 = vsub.s32 %v1502, %v1504
        %v1506 = vrot.slane %v1498, %v1505
        %v1508 = vunpack.c.l.s4 1934713408
        %v1509 = vunpack.c.0.s8 %v1508
        %v1510 = vlaneseq
        %v1511 = vshrl.u32 %v1510, 7
        %v1512 = vsub.s32 %v1509, %v1511
        %v1513 = vrot.slane %v1499, %v1512
        %v1514 = vcombine.high %v1490, 0.0
        %v1515 = vcombine.high %v1497, 0.0
        %v1516 = vcombine.high %v1506, 0.0
        %v1517 = vcombine.high %v1513, 0.0
        %v1518 = vcombine.low %v1490, %v1497
        %v1520 = vunpack.c.l.s4 1983009808
        %v1521 = vunpack.c.0.s8 %v1520
        %v1522 = vlaneseq
        %v1523 = vshrl.u32 %v1522, 7
        %v1524 = vsub.s32 %v1521, %v1523
        %v1525 = vrot.slane %v1518, %v1524
        %v1526 = vcombine.low %v1514, %v1515
        %v1528 = vunpack.c.l.s4 1983009808
        %v1529 = vunpack.c.0.s8 %v1528
        %v1530 = vlaneseq
        %v1531 = vshrl.u32 %v1530, 7
        %v1532 = vsub.s32 %v1529, %v1531
        %v1533 = vrot.slane %v1526, %v1532
        %v1534 = vcombine.low %v1506, %v1513
        %v1536 = vunpack.c.l.s4 1983009808
        %v1537 = vunpack.c.0.s8 %v1536
        %v1538 = vlaneseq
        %v1539 = vshrl.u32 %v1538, 7
        %v1540 = vsub.s32 %v1537, %v1539
        %v1541 = vrot.slane %v1534, %v1540
        %v1542 = vcombine.low %v1516, %v1517
        %v1544 = vunpack.c.l.s4 1983009808
        %v1545 = vunpack.c.0.s8 %v1544
        %v1546 = vlaneseq
        %v1547 = vshrl.u32 %v1546, 7
        %v1548 = vsub.s32 %v1545, %v1547
        %v1549 = vrot.slane %v1542, %v1548
        %v1550 = vcombine.low %v1525, %v1533
        %v1551 = vcombine.high %v1525, %v1533
        %v1553 = vunpack.c.l.s4 1934713408
        %v1554 = vunpack.c.0.s8 %v1553
        %v1555 = vlaneseq
        %v1556 = vshrl.u32 %v1555, 7
        %v1557 = vsub.s32 %v1554, %v1556
        %v1558 = vrot.slane %v1550, %v1557
        %v1560 = vunpack.c.l.s4 1934713408
        %v1561 = vunpack.c.0.s8 %v1560
        %v1562 = vlaneseq
        %v1563 = vshrl.u32 %v1562, 7
        %v1564 = vsub.s32 %v1561, %v1563
        %v1565 = vrot.slane %v1551, %v1564
        %v1566 = vcombine.low %v1541, %v1549
        %v1567 = vcombine.high %v1541, %v1549
        %v1569 = vunpack.c.l.s4 1934713408
        %v1570 = vunpack.c.0.s8 %v1569
        %v1571 = vlaneseq
        %v1572 = vshrl.u32 %v1571, 7
        %v1573 = vsub.s32 %v1570, %v1572
        %v1574 = vrot.slane %v1566, %v1573
        %v1576 = vunpack.c.l.s4 1934713408
        %v1577 = vunpack.c.0.s8 %v1576
        %v1578 = vlaneseq
        %v1579 = vshrl.u32 %v1578, 7
        %v1580 = vsub.s32 %v1577, %v1579
        %v1581 = vrot.slane %v1567, %v1580
        %v1582 = vcombine.low %v1558, %v1574
        %v1583 = vcombine.high %v1558, %v1574
        %v1584 = vcombine.low %v1565, %v1581
        %v1585 = vcombine.high %v1565, %v1581
        %1587 = vrot.lane.b32.xlu0 %v1583, 8
        %v1588 = vpop.permute.xlu0 %1587
        %1591 = vrot.lane.b32.xlu0 %v1584, 16
        %v1592 = vpop.permute.xlu0 %1591
        %1595 = vrot.lane.b32.xlu0 %v1585, 24
        %v1596 = vpop.permute.xlu0 %1595
        %v1598 = vsel %vm1024, %v1582, %v1588
        %vm1599 = vcmask 130048
        %v1600 = vsel %vm1599, %v1598, %v1592
        %vm1601 = vcmask 195584
        %v1602 = vsel %vm1601, %v1600, %v1596
        %v1603 = vpack.c.bf16 %v1602, %v1602
        %v1604 = vld [vmem:[%s4] sm:$0xf]
        %v1605 = vld [vmem:[%s4 + $0x4] sm:$0xf]
        %v1606 = vld [vmem:[%s4 + $0x8] sm:$0xf]
        %v1607 = vld [vmem:[%s4 + $0xc] sm:$0xf]
        %v1608 = vld [vmem:[%s5] sm:$0x1]
        %v1610 = vlaneseq
        %v1611 = vshrl.u32 %v1610, 7
        %v1612 = vsub.s32 0, %v1611
        %v1613 = vrot.slane %v1608, %v1612
        %v1619 = vunpack.c.l.b16 %v1604
        %v1620 = vunpack.c.l.b16 %v1605
        %v1621 = vunpack.c.l.b16 %v1606
        %v1622 = vunpack.c.l.b16 %v1607
        %v1623 = vpack.c.b16 %v1620, %v1619
        %v1624 = vpack.c.b16 %v1622, %v1621
        %v1628 = vsel %vm526, %v1603, 0
        %1630 = vmatprep.subr.bf16.mxu0 0
        %1631 = vmatpush1.bf16.msra.mxu0 0
        %1632 = vmatprep.subr.bf16.mxu0 0
        %1633 = vmatpush1.bf16.msra.mxu0 0
        %1634 = vmatprep.subr.bf16.mxu0 0
        %1635 = vmatpush1.bf16.msra.mxu0 0
        %1636 = vmatprep.subr.bf16.mxu0 0
        %1637 = vmatpush1.bf16.msra.mxu0 0
        %1638 = vmatprep.subr.bf16.mxu0 0
        %1639 = vmatpush1.bf16.msra.mxu0 0
        %1640 = vmatprep.subr.bf16.mxu0 0
        %1641 = vmatpush1.bf16.msra.mxu0 0
        %1642 = vmatprep.subr.bf16.mxu0 0
        %1643 = vmatpush1.bf16.msra.mxu0 %v1624
        %1644 = vmatprep.subr.bf16.mxu0 0
        %1645 = vmatpush1.bf16.msra.mxu0 %v1623
        %1646 = vmatprep.subr.bf16.mxu0 0
        %1647 = vmatpush2.bf16.msra.mxu0 0
        %1648 = vmatprep.subr.bf16.mxu0 0
        %1649 = vmatpush2.bf16.msra.mxu0 0
        %1650 = vmatprep.subr.bf16.mxu0 0
        %1651 = vmatpush2.bf16.msra.mxu0 0
        %1652 = vmatprep.subr.bf16.mxu0 0
        %1653 = vmatpush2.bf16.msra.mxu0 0
        %1654 = vmatprep.subr.bf16.mxu0 0
        %1655 = vmatpush2.bf16.msra.mxu0 0
        %1656 = vmatprep.subr.bf16.mxu0 0
        %1657 = vmatpush2.bf16.msra.mxu0 0
        %1658 = vmatprep.subr.bf16.mxu0 0
        %1659 = vmatpush2.bf16.msra.mxu0 0
        %1660 = vmatprep.subr.bf16.mxu0 0
        %1661 = vmatpush2.bf16.msra.mxu0 0
        %1662 = vmatprep.mubr.bf16.mxu0 0
        %1663 = vmatmul.mubr.bf16.gmra.mxu0 %v1628
        %v1664 = vpop.f32.mrf.mxu0
        %v1665 = vadd.f32 %v1613, %v1664
        %v1666 = vpop.f32.mrf.mxu0
        %v1667 = vpop.f32.mrf.mxu0
        %v1668 = vpop.f32.mrf.mxu0
        %1669 = vdwg.mxu0
        %v1670 = vadd.f32 %v495, %v1665
        %v1671 = vld [vmem:[#allocation4] sm:$0x1]
        %v1672 = vld [vmem:[#allocation7] sm:$0x1]
        %v1673 = vsel %vm526, %v1670, 0.0
        %1674 = vadd.xlane.f32.xlu0 %v1673
        %v1675 = vpop.xlane.xlu0 %1674
        %v1676 = vrcp.pop 32.0
        %v1677 = vmul.f32 %v1675, %v1676
        %v1678 = vsub.f32 %v1670, %v1677
        %v1679 = vmul.f32 %v1678, %v1678
        %v1680 = vsel %vm526, %v1679, 0.0
        %1681 = vadd.xlane.f32.xlu0 %v1680
        %v1682 = vpop.xlane.xlu0 %1681
        %v1683 = vmul.f32 %v1682, %v1676
        %v1684 = vadd.f32 %v1683, 1e-05
        %v1685 = vrsqrt.pop %v1684
        %v1686 = vmul.f32 %v1678, %v1685
        %v1688 = vlaneseq
        %v1689 = vshrl.u32 %v1688, 7
        %v1690 = vsub.s32 0, %v1689
        %v1691 = vrot.slane %v1671, %v1690
        %v1693 = vmul.f32 %v1686, %v1691
        %v1695 = vlaneseq
        %v1696 = vshrl.u32 %v1695, 7
        %v1697 = vsub.s32 0, %v1696
        %v1698 = vrot.slane %v1672, %v1697
        %v1700 = vadd.f32 %v1693, %v1698
        %v1701 = vpack.c.bf16 %v1700, %v1700
        %v1702 = vld [vmem:[#allocation9] sm:$0xf]
        %v1703 = vld [vmem:[#allocation9 + $0x4] sm:$0xf]
        %v1704 = vld [vmem:[#allocation9 + $0x8] sm:$0xf]
        %v1705 = vld [vmem:[#allocation9 + $0xc] sm:$0xf]
        %v1706 = vld [vmem:[#allocation10] sm:$0x1]
        %v1708 = vlaneseq
        %v1709 = vshrl.u32 %v1708, 7
        %v1710 = vsub.s32 0, %v1709
        %v1711 = vrot.slane %v1706, %v1710
        %v1717 = vunpack.c.l.b16 %v1702
        %v1718 = vunpack.c.l.b16 %v1703
        %v1719 = vunpack.c.l.b16 %v1704
        %v1720 = vunpack.c.l.b16 %v1705
        %v1721 = vpack.c.b16 %v1718, %v1717
        %v1722 = vpack.c.b16 %v1720, %v1719
        %v1726 = vsel %vm526, %v1701, 0
        %1728 = vmatprep.subr.bf16.mxu0 0
        %1729 = vmatpush1.bf16.msra.mxu0 0
        %1730 = vmatprep.subr.bf16.mxu0 0
        %1731 = vmatpush1.bf16.msra.mxu0 0
        %1732 = vmatprep.subr.bf16.mxu0 0
        %1733 = vmatpush1.bf16.msra.mxu0 0
        %1734 = vmatprep.subr.bf16.mxu0 0
        %1735 = vmatpush1.bf16.msra.mxu0 0
        %1736 = vmatprep.subr.bf16.mxu0 0
        %1737 = vmatpush1.bf16.msra.mxu0 0
        %1738 = vmatprep.subr.bf16.mxu0 0
        %1739 = vmatpush1.bf16.msra.mxu0 0
        %1740 = vmatprep.subr.bf16.mxu0 0
        %1741 = vmatpush1.bf16.msra.mxu0 %v1722
        %1742 = vmatprep.subr.bf16.mxu0 0
        %1743 = vmatpush1.bf16.msra.mxu0 %v1721
        %1744 = vmatprep.subr.bf16.mxu0 0
        %1745 = vmatpush2.bf16.msra.mxu0 0
        %1746 = vmatprep.subr.bf16.mxu0 0
        %1747 = vmatpush2.bf16.msra.mxu0 0
        %1748 = vmatprep.subr.bf16.mxu0 0
        %1749 = vmatpush2.bf16.msra.mxu0 0
        %1750 = vmatprep.subr.bf16.mxu0 0
        %1751 = vmatpush2.bf16.msra.mxu0 0
        %1752 = vmatprep.subr.bf16.mxu0 0
        %1753 = vmatpush2.bf16.msra.mxu0 0
        %1754 = vmatprep.subr.bf16.mxu0 0
        %1755 = vmatpush2.bf16.msra.mxu0 0
        %1756 = vmatprep.subr.bf16.mxu0 0
        %1757 = vmatpush2.bf16.msra.mxu0 0
        %1758 = vmatprep.subr.bf16.mxu0 0
        %1759 = vmatpush2.bf16.msra.mxu0 0
        %1760 = vmatprep.mubr.bf16.mxu0 0
        %1761 = vmatmul.mubr.bf16.gmra.mxu0 %v1726
        %v1762 = vpop.f32.mrf.mxu0
        %v1763 = vadd.f32 %v1711, %v1762
        %v1764 = vpop.f32.mrf.mxu0
        %v1765 = vpop.f32.mrf.mxu0
        %v1766 = vpop.f32.mrf.mxu0
        %1767 = vdwg.mxu0
        %v1768 = vmax.f32 %v1763, 0.0
        %v1769 = vpack.c.bf16 %v1768, %v1768
        %v1770 = vld [vmem:[%s10] sm:$0xf]
        %v1771 = vld [vmem:[%s10 + $0x4] sm:$0xf]
        %v1772 = vld [vmem:[%s10 + $0x8] sm:$0xf]
        %v1773 = vld [vmem:[%s10 + $0xc] sm:$0xf]
        %v1774 = vld [vmem:[%s10 + $0x10] sm:$0xf]
        %v1775 = vld [vmem:[%s10 + $0x14] sm:$0xf]
        %v1776 = vld [vmem:[%s10 + $0x18] sm:$0xf]
        %v1777 = vld [vmem:[%s10 + $0x1c] sm:$0xf]
        %v1778 = vld [vmem:[%s11] sm:$0x1]
        %v1780 = vlaneseq
        %v1781 = vshrl.u32 %v1780, 7
        %v1782 = vsub.s32 0, %v1781
        %v1783 = vrot.slane %v1778, %v1782
        %v1793 = vunpack.c.l.b16 %v1770
        %v1794 = vunpack.c.l.b16 %v1771
        %v1795 = vunpack.c.l.b16 %v1772
        %v1796 = vunpack.c.l.b16 %v1773
        %v1797 = vunpack.c.l.b16 %v1774
        %v1798 = vunpack.c.l.b16 %v1775
        %v1799 = vunpack.c.l.b16 %v1776
        %v1800 = vunpack.c.l.b16 %v1777
        %v1801 = vpack.c.b16 %v1794, %v1793
        %v1802 = vpack.c.b16 %v1796, %v1795
        %v1803 = vpack.c.b16 %v1798, %v1797
        %v1804 = vpack.c.b16 %v1800, %v1799
        %vm1809 = vcmask 523264
        %v1811 = vsel %vm1809, %v1769, 0
        %1813 = vmatprep.subr.bf16.mxu0 0
        %1814 = vmatpush1.bf16.msra.mxu0 0
        %1815 = vmatprep.subr.bf16.mxu0 0
        %1816 = vmatpush1.bf16.msra.mxu0 0
        %1817 = vmatprep.subr.bf16.mxu0 0
        %1818 = vmatpush1.bf16.msra.mxu0 0
        %1819 = vmatprep.subr.bf16.mxu0 0
        %1820 = vmatpush1.bf16.msra.mxu0 0
        %1821 = vmatprep.subr.bf16.mxu0 0
        %1822 = vmatpush1.bf16.msra.mxu0 %v1804
        %1823 = vmatprep.subr.bf16.mxu0 0
        %1824 = vmatpush1.bf16.msra.mxu0 %v1803
        %1825 = vmatprep.subr.bf16.mxu0 0
        %1826 = vmatpush1.bf16.msra.mxu0 %v1802
        %1827 = vmatprep.subr.bf16.mxu0 0
        %1828 = vmatpush1.bf16.msra.mxu0 %v1801
        %1829 = vmatprep.subr.bf16.mxu0 0
        %1830 = vmatpush2.bf16.msra.mxu0 0
        %1831 = vmatprep.subr.bf16.mxu0 0
        %1832 = vmatpush2.bf16.msra.mxu0 0
        %1833 = vmatprep.subr.bf16.mxu0 0
        %1834 = vmatpush2.bf16.msra.mxu0 0
        %1835 = vmatprep.subr.bf16.mxu0 0
        %1836 = vmatpush2.bf16.msra.mxu0 0
        %1837 = vmatprep.subr.bf16.mxu0 0
        %1838 = vmatpush2.bf16.msra.mxu0 0
        %1839 = vmatprep.subr.bf16.mxu0 0
        %1840 = vmatpush2.bf16.msra.mxu0 0
        %1841 = vmatprep.subr.bf16.mxu0 0
        %1842 = vmatpush2.bf16.msra.mxu0 0
        %1843 = vmatprep.subr.bf16.mxu0 0
        %1844 = vmatpush2.bf16.msra.mxu0 0
        %1845 = vmatprep.mubr.bf16.mxu0 0
        %1846 = vmatmul.mubr.bf16.gmra.mxu0 %v1811
        %v1847 = vpop.f32.mrf.mxu0
        %v1848 = vadd.f32 %v1783, %v1847
        %v1849 = vpop.f32.mrf.mxu0
        %v1850 = vpop.f32.mrf.mxu0
        %v1851 = vpop.f32.mrf.mxu0
        %1852 = vdwg.mxu0
        %v1853 = vadd.f32 %v1700, %v1848
        %v1854 = vld [vmem:[%s12] sm:$0x1]
        %v1855 = vld [vmem:[%s13] sm:$0x1]
        %v1856 = vsel %vm526, %v1853, 0.0
        %1857 = vadd.xlane.f32.xlu0 %v1856
        %v1858 = vpop.xlane.xlu0 %1857
        %v1859 = vmul.f32 %v1858, %v1676
        %v1860 = vsub.f32 %v1853, %v1859
        %v1861 = vmul.f32 %v1860, %v1860
        %v1862 = vsel %vm526, %v1861, 0.0
        %1863 = vadd.xlane.f32.xlu0 %v1862
        %v1864 = vpop.xlane.xlu0 %1863
        %v1865 = vmul.f32 %v1864, %v1676
        %v1866 = vadd.f32 %v1865, 1e-05
        %v1867 = vrsqrt.pop %v1866
        %v1868 = vmul.f32 %v1860, %v1867
        %v1870 = vlaneseq
        %v1871 = vshrl.u32 %v1870, 7
        %v1872 = vsub.s32 0, %v1871
        %v1873 = vrot.slane %v1854, %v1872
        %v1875 = vmul.f32 %v1868, %v1873
        %v1877 = vlaneseq
        %v1878 = vshrl.u32 %v1877, 7
        %v1879 = vsub.s32 0, %v1878
        %v1880 = vrot.slane %v1855, %v1879
        %v1882 = vadd.f32 %v1875, %v1880
        %1883 = vst.msk [vmem:[%s489] sm:$0xff] %vm526, %v1882
        %s1884 = sand.u32 %s321, 1
        %s1885 = scalar_lea.sflag [#allocation6], %s1884
        %s1886 = sand.u32 %s321, 1
        %s1887 = smul.addr %s1886, 8
        %s1888 = scalar_lea.vmem [#allocation12], %s1887
        // Predicated region
        $region89: #{tpu_custom_call.1} parent=71 // pred_check
          %p1889 = pneg %p331
        $region90: #{tpu_custom_call.1} parent=71 // pred_check_branch
          %1891 = sbr.rel (%p1889) target = $region92
        $region91: #{tpu_custom_call.1} parent=71 // pred_region
          %s1893 = ssub.s32 128, 128
          %1894 = vsyncadd %s1885, %s1893
          %s1895 = smul.addr %s35, 128
          %s1896 = scalar_lea.hbm %s14, %s1895
          %s1898 = sshll.u32 %s1888, 4
          %s1899 = int_to_ptr.vmem [resolvable:$true] %s1898
          %1901 = dma.vmem_to_hbm [thread:$0]  %s1899, 128, %s1896, %s1885
        $region92: #{tpu_custom_call.1} parent=71 // pred_fallthru
          _
      $region72: #{tpu_custom_call.1} parent=5 // pred_fallthru
        _
      %p1902 = scmp.le.s32.totalorder 2, %s30
      // Predicated region
      $region93: #{tpu_custom_call.1} parent=5 // pred_check
        %p1903 = pneg %p1902
      $region94: #{tpu_custom_call.1} parent=5 // pred_check_branch
        %1905 = sbr.rel (%p1903) target = $region96
      $region95: #{tpu_custom_call.1} parent=5 // pred_region
        %s1906 = ssub.s32 %s30, 2
        // Predicated region
        $region97: #{tpu_custom_call.1} parent=95 // pred_check
          %p1907 = pneg %p337
        $region98: #{tpu_custom_call.1} parent=95 // pred_check_branch
          %1909 = sbr.rel (%p1907) target = $region100
        $region99: #{tpu_custom_call.1} parent=95 // pred_region
          %s1910 = sand.u32 %s322, 1
          %s1911 = scalar_lea.sflag [#allocation6], %s1910
          %s1912 = sand.u32 %s322, 1
          %s1913 = smul.addr %s1912, 8
          %s1914 = scalar_lea.vmem [#allocation12], %s1913
          %1915 = dma.done %s1911, 128
        $region100: #{tpu_custom_call.1} parent=95 // pred_fallthru
          _
      $region96: #{tpu_custom_call.1} parent=5 // pred_fallthru
        _
    $region6: #{tpu_custom_call.1} parent=1 // loop_footer
      %s34 = sadd.s32 1, %s30
    $region7: #{tpu_custom_call.1} parent=1 // loop_footer_branch
      %29 = sbr.rel target = $region3
    $region8: #{tpu_custom_call.1} parent=1 // loop_exit
      _
    %1916 = vsyncpa [#allocation5], 1
    %s1917 = scalar_lea.sflag [#allocation5], 1
    %1918 = vsyncpa %s1917, 1
    %1919 = vsyncpa [#allocation8], 1
    %1920 = vsyncpa [#allocation11], 1
    %1921 = vsyncpa [#allocation6], 1
    %s1922 = scalar_lea.sflag [#allocation6], 1
    %1923 = vsyncpa %s1922, 1

</llo_original>
